<compile_context>
chip_gen: v7x
topology: tpu7x:2x2x1
jax: 0.10.0
libtpu: 0.0.40
codegen_flags: <defaults>
</compile_context>

<pallas_src>
import functools
import math

import jax
import jax.numpy as jnp
from jax.experimental import pallas as pl
from jax.experimental.pallas import tpu as pltpu


# ----------------------------------------------------------------------------
# Tiling / padding helpers
# ----------------------------------------------------------------------------
_TM_CAP = 256   # row (sublane) tile cap.  TODO(synk): per-gen tuning — raise
                # toward 512 on v5e/v6e (128 MiB VMEM), keep 256 on v7x.
_TN_CAP = 512   # output-feature (lane) tile cap
_TK_CAP = 512   # contraction tile cap


def _round_up(x, m):
    return ((x + m - 1) // m) * m


def _pad_rows_amount(m):
    """Row count padded so row tiles stay MXU-shaped (128-mult when large)."""
    return _round_up(m, 128) if m >= 128 else _round_up(m, 8)


def _pad_rows(x, m_pad):
    m = x.shape[0]
    if m == m_pad:
        return x
    return jnp.pad(x, ((0, m_pad - m), (0, 0)))


def _row_tile(m_pad):
    for t in (_TM_CAP, 128):
        if m_pad % t == 0:
            return t
    return m_pad            # small case; m_pad is already a multiple of 8


def _col_tile(dim, cap):
    """Largest 128-multiple divisor of `dim` <= cap; else the full dim."""
    if dim <= cap:
        return dim
    start = cap - (cap % 128)
    for t in range(start, 0, -128):
        if dim % t == 0:
            return t
    return dim              # full dim is always a legal block


def _compiler_params(sem, block_bytes):
    # block_bytes already counts double-buffering; clamp inside v7x's 64 MiB.
    need = int(block_bytes) + (4 << 20)
    limit = min(64 << 20, max(32 << 20, need))
    return pltpu.CompilerParams(dimension_semantics=sem, vmem_limit_bytes=limit)


def _erf(z):
    # Abramowitz-Stegun 7.1.26 (|err| <= 1.5e-7): f32-exact erf using only
    # exp / VPU ops, so it lowers on all TPU gens and stays off the MXU path.
    a1, a2, a3, a4, a5 = (0.254829592, -0.284496736, 1.421413741,
                          -1.453152027, 1.061405429)
    p = 0.3275911
    sgn = jnp.where(z < 0.0, -1.0, 1.0)
    za = jnp.abs(z)
    t = 1.0 / (1.0 + p * za)
    poly = ((((a5 * t + a4) * t + a3) * t + a2) * t + a1) * t
    return sgn * (1.0 - poly * jnp.exp(-za * za))


def _gelu_exact(x):
    # PyTorch nn.GELU default (erf form).
    return 0.5 * x * (1.0 + _erf(x * (1.0 / math.sqrt(2.0))))


# ----------------------------------------------------------------------------
# Pallas kernels
# ----------------------------------------------------------------------------
def _ln_linear_kernel(x_ref, g_ref, b_ref, w_ref, bias_ref, o_ref, xn_ref, *,
                      eps, activation):
    # LayerNorm of the (tm, K) row tile is computed once (first column tile)
    # into a bf16 VMEM scratch and reused for the remaining output tiles.
    @pl.when(pl.program_id(1) == 0)
    def _():
        x = x_ref[...].astype(jnp.float32)
        mu = jnp.mean(x, axis=-1, keepdims=True)
        xc = x - mu
        var = jnp.mean(xc * xc, axis=-1, keepdims=True)
        xn = xc * jax.lax.rsqrt(var + eps) * g_ref[...] + b_ref[...]
        xn_ref[...] = xn.astype(jnp.bfloat16)

    acc = jnp.dot(xn_ref[...], w_ref[...], preferred_element_type=jnp.float32)
    acc = acc + bias_ref[...]
    if activation == "gelu":
        acc = _gelu_exact(acc)
    o_ref[...] = acc.astype(o_ref.dtype)


def _linear_kernel(x_ref, w_ref, b_ref, o_ref, acc_ref):
    @pl.when(pl.program_id(2) == 0)
    def _():
        acc_ref[...] = jnp.zeros_like(acc_ref)

    acc_ref[...] += jnp.dot(x_ref[...].astype(jnp.bfloat16), w_ref[...],
                            preferred_element_type=jnp.float32)

    @pl.when(pl.program_id(2) == pl.num_programs(2) - 1)
    def _():
        o_ref[...] = (acc_ref[...] + b_ref[...]).astype(o_ref.dtype)


def _linear_res_ls_kernel(x_ref, w_ref, b_ref, ls_ref, res_ref, o_ref, acc_ref):
    # out = residual + layerscale * (x @ w + bias); K tiled, f32 accumulator.
    @pl.when(pl.program_id(2) == 0)
    def _():
        acc_ref[...] = jnp.zeros_like(acc_ref)

    acc_ref[...] += jnp.dot(x_ref[...].astype(jnp.bfloat16), w_ref[...],
                            preferred_element_type=jnp.float32)

    @pl.when(pl.program_id(2) == pl.num_programs(2) - 1)
    def _():
        o_ref[...] = (res_ref[...]
                      + ls_ref[...] * (acc_ref[...] + b_ref[...])
                      ).astype(o_ref.dtype)


def _attn_kernel(q_ref, k_ref, v_ref, o_ref, *, scale):
    # One (b, head) and one q-row tile per grid step; K/V carry the full
    # (unpadded) key length so a plain softmax over axis -1 is exact.
    q = (q_ref[0].astype(jnp.float32) * scale).astype(jnp.bfloat16)   # (tq, dh)
    k = k_ref[0]                                                      # (S, dh)
    v = v_ref[0]                                                      # (S, dh)
    s = jax.lax.dot_general(q, k, (((1,), (1,)), ((), ())),
                            preferred_element_type=jnp.float32)       # (tq, S)
    m = jnp.max(s, axis=-1, keepdims=True)
    p = jnp.exp(s - m)
    l = jnp.sum(p, axis=-1, keepdims=True)
    o = jnp.dot(p.astype(jnp.bfloat16), v, preferred_element_type=jnp.float32)
    o_ref[0] = (o * pl.reciprocal(l, approx=False)).astype(o_ref.dtype)


def _layernorm_kernel(x_ref, g_ref, b_ref, o_ref, *, eps):
    x = x_ref[...].astype(jnp.float32)
    mu = jnp.mean(x, axis=-1, keepdims=True)
    xc = x - mu
    var = jnp.mean(xc * xc, axis=-1, keepdims=True)
    o_ref[...] = (xc * jax.lax.rsqrt(var + eps) * g_ref[...]
                  + b_ref[...]).astype(o_ref.dtype)


# ----------------------------------------------------------------------------
# Pallas wrappers
# ----------------------------------------------------------------------------
def pallas_ln_linear(x, gamma, beta, w, b, activation=None, eps=1e-6,
                     out_dtype=jnp.bfloat16):
    """LayerNorm(x) @ w + b (optional exact GELU). K stays whole (LN needs it)."""
    M, K = x.shape
    N = w.shape[1]
    tm = _row_tile(M)
    tn = _col_tile(N, _TN_CAP)
    w = w.astype(jnp.bfloat16)          # no-op: params already bf16
    blk = (2 * (tm * K * 4 + K * tn * 2 + 2 * K * 4 + tn * 4 + tm * tn * 4)
           + tm * K * 2 + 2 * tm * tn * 4)
    return pl.pallas_call(
        functools.partial(_ln_linear_kernel, eps=eps, activation=activation),
        out_shape=jax.ShapeDtypeStruct((M, N), out_dtype),
        grid=(M // tm, N // tn),
        in_specs=[
            pl.BlockSpec((tm, K), lambda i, j: (i, 0)),
            pl.BlockSpec((1, K), lambda i, j: (0, 0)),
            pl.BlockSpec((1, K), lambda i, j: (0, 0)),
            pl.BlockSpec((K, tn), lambda i, j: (0, j)),
            pl.BlockSpec((1, tn), lambda i, j: (0, j)),
        ],
        out_specs=pl.BlockSpec((tm, tn), lambda i, j: (i, j)),
        scratch_shapes=[pltpu.VMEM((tm, K), jnp.bfloat16)],
        # j must stay sequential per core: the LN scratch is written at j==0.
        compiler_params=_compiler_params(("parallel", "arbitrary"), blk),
    )(x, gamma.reshape(1, K), beta.reshape(1, K), w, b.reshape(1, N))


def pallas_linear(x, w, b, out_dtype=None):
    """x @ w + b with K-tiled f32 accumulation (patch embed)."""
    M, K = x.shape
    N = w.shape[1]
    out_dtype = out_dtype or x.dtype
    tm = _row_tile(M)
    tn = _col_tile(N, _TN_CAP)
    tk = _col_tile(K, _TK_CAP)
    w = w.astype(jnp.bfloat16)
    blk = 2 * (tm * tk * 4 + tk * tn * 2 + tn * 4 + tm * tn * 4) + tm * tn * 4
    return pl.pallas_call(
        _linear_kernel,
        out_shape=jax.ShapeDtypeStruct((M, N), out_dtype),
        grid=(M // tm, N // tn, K // tk),
        in_specs=[
            pl.BlockSpec((tm, tk), lambda i, j, k: (i, k)),
            pl.BlockSpec((tk, tn), lambda i, j, k: (k, j)),
            pl.BlockSpec((1, tn), lambda i, j, k: (0, j)),
        ],
        out_specs=pl.BlockSpec((tm, tn), lambda i, j, k: (i, j)),
        scratch_shapes=[pltpu.VMEM((tm, tn), jnp.float32)],
        compiler_params=_compiler_params(
            ("parallel", "parallel", "arbitrary"), blk),
    )(x, w, b.reshape(1, N))


def pallas_linear_residual_ls(x, w, b, ls, residual):
    """residual + ls * (x @ w + b); residual buffer aliased to the output."""
    M, K = x.shape
    N = w.shape[1]
    tm = _row_tile(M)
    tn = _col_tile(N, _TN_CAP)
    tk = _col_tile(K, _TK_CAP)
    w = w.astype(jnp.bfloat16)
    blk = (2 * (tm * tk * 4 + tk * tn * 2 + 2 * tn * 4 + 2 * tm * tn * 4)
           + tm * tn * 4)
    return pl.pallas_call(
        _linear_res_ls_kernel,
        out_shape=jax.ShapeDtypeStruct((M, N), residual.dtype),
        grid=(M // tm, N // tn, K // tk),
        in_specs=[
            pl.BlockSpec((tm, tk), lambda i, j, k: (i, k)),
            pl.BlockSpec((tk, tn), lambda i, j, k: (k, j)),
            pl.BlockSpec((1, tn), lambda i, j, k: (0, j)),
            pl.BlockSpec((1, tn), lambda i, j, k: (0, j)),
            pl.BlockSpec((tm, tn), lambda i, j, k: (i, j)),
        ],
        out_specs=pl.BlockSpec((tm, tn), lambda i, j, k: (i, j)),
        scratch_shapes=[pltpu.VMEM((tm, tn), jnp.float32)],
        input_output_aliases={4: 0},
        compiler_params=_compiler_params(
            ("parallel", "parallel", "arbitrary"), blk),
    )(x, w, b.reshape(1, N), ls.reshape(1, N), residual)


def pallas_attention(q, k, v):
    """q, k, v: (B*H, S, dh) bf16, head-major.  Returns (B*H, S, dh) bf16."""
    BH, S, dh = q.shape
    tq = 128 if S >= 128 else _round_up(S, 8)
    s_q = _round_up(S, tq)
    if s_q != S:
        # Pad queries only (rows independent, sliced off after); keys/values
        # stay unpadded so no attention mask is needed.
        q = jnp.pad(q, ((0, 0), (0, s_q - S), (0, 0)))
    scale = dh ** -0.5
    blk = (4 * (tq * dh * 2)            # q + out tiles, double-buffered
           + 4 * (S * dh * 2)           # k + v slabs, double-buffered
           + 3 * tq * S * 4)            # f32 score / exp intermediates
    out = pl.pallas_call(
        functools.partial(_attn_kernel, scale=scale),
        out_shape=jax.ShapeDtypeStruct((BH, s_q, dh), jnp.bfloat16),
        grid=(BH, s_q // tq),
        in_specs=[
            pl.BlockSpec((1, tq, dh), lambda b, i: (b, i, 0)),
            pl.BlockSpec((1, S, dh), lambda b, i: (b, 0, 0)),   # 1 DMA per b
            pl.BlockSpec((1, S, dh), lambda b, i: (b, 0, 0)),
        ],
        out_specs=pl.BlockSpec((1, tq, dh), lambda b, i: (b, i, 0)),
        compiler_params=_compiler_params(("parallel", "parallel"), blk),
    )(q, k, v)
    return out[:, :S, :] if s_q != S else out


def pallas_layernorm(x, gamma, beta, eps=1e-6):
    M, D = x.shape
    tm = _row_tile(M)
    blk = 2 * (2 * tm * D * 4 + 2 * D * 4)
    return pl.pallas_call(
        functools.partial(_layernorm_kernel, eps=eps),
        out_shape=jax.ShapeDtypeStruct((M, D), x.dtype),
        grid=(M // tm,),
        in_specs=[
            pl.BlockSpec((tm, D), lambda i: (i, 0)),
            pl.BlockSpec((1, D), lambda i: (0, 0)),
            pl.BlockSpec((1, D), lambda i: (0, 0)),
        ],
        out_specs=pl.BlockSpec((tm, D), lambda i: (i, 0)),
        compiler_params=_compiler_params(("parallel",), blk),
    )(x, gamma.reshape(1, D), beta.reshape(1, D))


# ----------------------------------------------------------------------------
# DINOv2-style ViT built from the kernels above
# ----------------------------------------------------------------------------
def _split_heads(qkv, B, S, H, dh):
    """(M_pad, 3D) bf16 -> q, k, v each (B*H, S, dh), head-major."""
    qkv = qkv[:B * S].reshape(B, S, 3, H, dh)
    # TODO(synk): this head-major shuffle could be emitted directly from the
    # QKV projection epilogue; kept as a cheap XLA transpose on bf16 data.
    qkv = jnp.transpose(qkv, (2, 0, 3, 1, 4)).reshape(3, B * H, S, dh)
    return qkv[0], qkv[1], qkv[2]


def _merge_heads(attn, B, S, H, dh, m_pad):
    """(B*H, S, dh) -> (m_pad, H*dh) bf16, token-major."""
    attn = attn.reshape(B, H, S, dh).transpose(0, 2, 1, 3).reshape(B * S, H * dh)
    return _pad_rows(attn, m_pad)


def _block_forward(xf, p, B, S, num_heads, m_pad):
    D = p["proj_w"].shape[1]
    dh = D // num_heads

    # --- attention branch: LN1 fused into QKV (bf16 out), q/head-tiled attn ---
    qkv = pallas_ln_linear(xf, p["n1_g"], p["n1_b"], p["qkv_w"], p["qkv_b"])
    q, k, v = _split_heads(qkv, B, S, num_heads, dh)
    attn = pallas_attention(q, k, v)                         # (B*H, S, dh) bf16
    attn = _merge_heads(attn, B, S, num_heads, dh, m_pad)    # (m_pad, D) bf16
    xf = pallas_linear_residual_ls(attn, p["proj_w"], p["proj_b"], p["ls1"], xf)

    # --- MLP branch: LN2 + exact GELU fused into fc1, residual+LS into fc2 ---
    h = pallas_ln_linear(xf, p["n2_g"], p["n2_b"], p["fc1_w"], p["fc1_b"],
                         activation="gelu")
    xf = pallas_linear_residual_ls(h, p["fc2_w"], p["fc2_b"], p["ls2"], xf)
    return xf


def dino_forward_features(x, params, patch_size, num_heads):
    """Returns x_norm_patchtokens: (B, N_patches, embed_dim)."""
    B, C, H, W = x.shape
    oh, ow = H // patch_size, W // patch_size
    N = oh * ow
    S = N + 1
    D = params["patch_b"].shape[0]

    # Patch-embed conv (stride == kernel == patch) == gather non-overlapping
    # patches flattened in (C, ph, pw) order, then one tiled Pallas matmul.
    patches = (
        x.reshape(B, C, oh, patch_size, ow, patch_size)
        .transpose(0, 2, 4, 1, 3, 5)
        .reshape(B * N, C * patch_size * patch_size)
    )
    rp = _pad_rows_amount(B * N)
    tok = pallas_linear(_pad_rows(patches, rp), params["patch_w"],
                        params["patch_b"])[:B * N]
    tok = tok.reshape(B, N, D)

    # TODO(synk): cls-concat + pos-add kept as one cheap XLA op before blocks.
    cls = jnp.broadcast_to(params["cls"], (B, 1, D))
    xseq = jnp.concatenate([cls, tok], axis=1) + params["pos"]     # (B, S, D)

    # Residual stream padded to a tile-friendly row count (pad rows are
    # independent garbage, never mixed with real tokens, dropped at the end).
    m_pad = _pad_rows_amount(B * S)
    xf = _pad_rows(xseq.reshape(B * S, D), m_pad)                  # f32

    for blk in params["blocks"]:
        xf = _block_forward(xf, blk, B, S, num_heads, m_pad)

    xn = pallas_layernorm(xf, params["norm_g"], params["norm_b"])[:B * S]
    xn = xn.reshape(B, S, D)
    return xn[:, 1:, :]          # drop cls token -> x_norm_patchtokens


def dinov2_feature_extractor(x, params, patch_size, num_heads):
    """Pallas equivalent of DinoV2FeatureExtractor.forward (NCHW in / out)."""
    b, c, h, w = x.shape
    out_h, out_w = h // patch_size, w // patch_size
    patch_tokens = dino_forward_features(x, params, patch_size, num_heads)
    reshaped = patch_tokens.reshape(b, out_h, out_w, -1)           # .view(...)
    # TODO(synk): final NCHW permute kept as an XLA transpose; a lane-dense
    # Pallas epilogue writing (B*D, oh*ow) directly would avoid it.
    return jnp.transpose(reshaped, (0, 3, 1, 2))                   # .permute(0,3,1,2)


# ----------------------------------------------------------------------------
# Deterministic parameter init (synthetic weights; tiny DINOv2 shapes)
# ----------------------------------------------------------------------------
def init_params(key, in_chans, patch_size, embed_dim, depth, num_heads,
                mlp_ratio, num_patches):
    def nrm(k, shape, scale=0.02, dtype=jnp.float32):
        return (scale * jax.random.normal(k, shape, dtype=jnp.float32)).astype(dtype)

    hidden = embed_dim * mlp_ratio
    keys = jax.random.split(key, 4 + depth)
    params = {
        # Weights stored bf16 once (MXU feed dtype): no per-forward convert
        # pass and half the weight DMA into the K-tiled linears.
        "patch_w": nrm(keys[0], (in_chans * patch_size * patch_size, embed_dim),
                       dtype=jnp.bfloat16),
        "patch_b": jnp.zeros((embed_dim,), jnp.float32),
        "cls": nrm(keys[1], (1, 1, embed_dim)),
        "pos": nrm(keys[2], (1, num_patches + 1, embed_dim)),
        "norm_g": jnp.ones((embed_dim,), jnp.float32),
        "norm_b": jnp.zeros((embed_dim,), jnp.float32),
        "blocks": [],
    }
    for d in range(depth):
        bk = jax.random.split(keys[4 + d], 6)
        params["blocks"].append({
            "n1_g": jnp.ones((embed_dim,), jnp.float32),
            "n1_b": jnp.zeros((embed_dim,), jnp.float32),
            "qkv_w": nrm(bk[0], (embed_dim, 3 * embed_dim), dtype=jnp.bfloat16),
            "qkv_b": nrm(bk[1], (3 * embed_dim,)),
            "proj_w": nrm(bk[2], (embed_dim, embed_dim), dtype=jnp.bfloat16),
            "proj_b": jnp.zeros((embed_dim,), jnp.float32),
            "ls1": jnp.full((embed_dim,), 1e-2, jnp.float32),
            "n2_g": jnp.ones((embed_dim,), jnp.float32),
            "n2_b": jnp.zeros((embed_dim,), jnp.float32),
            "fc1_w": nrm(bk[3], (embed_dim, hidden), dtype=jnp.bfloat16),
            "fc1_b": nrm(bk[4], (hidden,)),
            "fc2_w": nrm(bk[5], (hidden, embed_dim), dtype=jnp.bfloat16),
            "fc2_b": jnp.zeros((embed_dim,), jnp.float32),
            "ls2": jnp.full((embed_dim,), 1e-2, jnp.float32),
        })
    return params


# ----------------------------------------------------------------------------
if __name__ == "__main__":
    B, C, H, W = 2, 3, 28, 28      # small image, divisible by patch_size
    PATCH = 14                     # DinoV2FeatureExtractor default patch_size
    EMBED = 32
    DEPTH = 2
    HEADS = 2
    MLP_RATIO = 4

    out_h, out_w = H // PATCH, W // PATCH
    num_patches = out_h * out_w

    key = jax.random.PRNGKey(0)
    kx, kp = jax.random.split(key)
    x = jax.random.normal(kx, (B, C, H, W), dtype=jnp.float32)
    params = init_params(kp, C, PATCH, EMBED, DEPTH, HEADS, MLP_RATIO,
                         num_patches)

    fwd = jax.jit(functools.partial(dinov2_feature_extractor,
                                    patch_size=PATCH, num_heads=HEADS))
    feats = jax.block_until_ready(fwd(x, params))

    assert feats.shape == (B, EMBED, out_h, out_w), feats.shape
    assert feats.dtype == jnp.float32
    print("KERNEL_OK")
</pallas_src>

<mosaic_0001>
module attributes {stable_mosaic.version = 11 : i64} {
  func.func @_linear_kernel(%arg0: i32, %arg1: i32, %arg2: i32, %arg3: memref<8x588xf32, #tpu.memory_space<vmem>>, %arg4: memref<588x32xbf16, #tpu.memory_space<vmem>>, %arg5: memref<1x32xf32, #tpu.memory_space<vmem>>, %arg6: memref<8x32xf32, #tpu.memory_space<vmem>>, %arg7: memref<8x32xf32, #tpu.memory_space<vmem>>) attributes {dimension_semantics = [#tpu.dimension_semantics<parallel>, #tpu.dimension_semantics<parallel>, #tpu.dimension_semantics<arbitrary>], iteration_bounds = array<i64: 1, 1, 1>, scalar_prefetch = 0 : i64, scratch_operands = 1 : i64, tpu.core_type = #tpu.core_type<tc>, window_params = [{transform_indices = @transform_0, window_bounds = array<i64: 8, 588>}, {transform_indices = @transform_1, window_bounds = array<i64: 588, 32>}, {transform_indices = @transform_2, window_bounds = array<i64: 1, 32>}, {transform_indices = @transform_3, window_bounds = array<i64: 8, 32>}]} {
    %c0_i32 = arith.constant 0 : i32
    %0 = arith.cmpi eq, %arg2, %c0_i32 : i32
    %1 = arith.extui %0 : i1 to i32
    %c0_i32_0 = arith.constant 0 : i32
    %2 = arith.cmpi ne, %1, %c0_i32_0 : i32
    scf.if %2 {
      %cst_10 = arith.constant 0.000000e+00 : f32
      %13 = vector.broadcast %cst_10 : f32 to vector<8x32xf32>
      %c0_11 = arith.constant 0 : index
      %c0_12 = arith.constant 0 : index
      %14 = vector.load %arg7[%c0_11, %c0_12] : memref<8x32xf32, #tpu.memory_space<vmem>>, vector<8x32xf32>
      tpu.vector_store %arg7[%c0_11, %c0_12], %13 {strides = array<i32>} : memref<8x32xf32, #tpu.memory_space<vmem>>, vector<8x32xf32>,
    } else {
    }
    %c0 = arith.constant 0 : index
    %c0_1 = arith.constant 0 : index
    %3 = vector.load %arg7[%c0, %c0_1] : memref<8x32xf32, #tpu.memory_space<vmem>>, vector<8x32xf32>
    %c0_2 = arith.constant 0 : index
    %c0_3 = arith.constant 0 : index
    %4 = vector.load %arg3[%c0_2, %c0_3] : memref<8x588xf32, #tpu.memory_space<vmem>>, vector<8x588xf32>
    %5 = arith.truncf %4 : vector<8x588xf32> to vector<8x588xbf16>
    %c0_4 = arith.constant 0 : index
    %c0_5 = arith.constant 0 : index
    %6 = vector.load %arg4[%c0_4, %c0_5] : memref<588x32xbf16, #tpu.memory_space<vmem>>, vector<588x32xbf16>
    %cst = arith.constant dense<0.000000e+00> : vector<8x32xf32>
    %7 = tpu.matmul %5, %6, %cst {dimension_numbers = #tpu.dot_dimension_numbers<[1], [0], [0], [1], [0, 0, 1, 1], [], []>} : vector<8x588xbf16>, vector<588x32xbf16>, vector<8x32xf32> -> vector<8x32xf32>
    %8 = arith.addf %3, %7 : vector<8x32xf32>
    %c0_6 = arith.constant 0 : index
    %c0_7 = arith.constant 0 : index
    %9 = vector.load %arg7[%c0_6, %c0_7] : memref<8x32xf32, #tpu.memory_space<vmem>>, vector<8x32xf32>
    tpu.vector_store %arg7[%c0_6, %c0_7], %8 {strides = array<i32>} : memref<8x32xf32, #tpu.memory_space<vmem>>, vector<8x32xf32>,
    %c0_i32_8 = arith.constant 0 : i32
    %10 = arith.cmpi eq, %arg2, %c0_i32_8 : i32
    %11 = arith.extui %10 : i1 to i32
    %c0_i32_9 = arith.constant 0 : i32
    %12 = arith.cmpi ne, %11, %c0_i32_9 : i32
    scf.if %12 {
      %c0_10 = arith.constant 0 : index
      %c0_11 = arith.constant 0 : index
      %13 = vector.load %arg7[%c0_10, %c0_11] : memref<8x32xf32, #tpu.memory_space<vmem>>, vector<8x32xf32>
      %c0_12 = arith.constant 0 : index
      %c0_13 = arith.constant 0 : index
      %14 = vector.load %arg5[%c0_12, %c0_13] : memref<1x32xf32, #tpu.memory_space<vmem>>, vector<1x32xf32>
      %15 = vector.broadcast %14 : vector<1x32xf32> to vector<8x32xf32>
      %16 = arith.addf %13, %15 : vector<8x32xf32>
      %c0_14 = arith.constant 0 : index
      %c0_15 = arith.constant 0 : index
      %17 = vector.load %arg6[%c0_14, %c0_15] : memref<8x32xf32, #tpu.memory_space<vmem>>, vector<8x32xf32>
      tpu.vector_store %arg6[%c0_14, %c0_15], %16 {strides = array<i32>} : memref<8x32xf32, #tpu.memory_space<vmem>>, vector<8x32xf32>,
    } else {
    }
    return
  }
  func.func @transform_0(%arg0: i32, %arg1: i32, %arg2: i32) -> (i32, i32) {
    %c0_i32 = arith.constant 0 : i32
    return %arg0, %arg2 : i32, i32
  }
  func.func @transform_1(%arg0: i32, %arg1: i32, %arg2: i32) -> (i32, i32) {
    %c0_i32 = arith.constant 0 : i32
    return %arg2, %arg1 : i32, i32
  }
  func.func @transform_2(%arg0: i32, %arg1: i32, %arg2: i32) -> (i32, i32) {
    %c0_i32 = arith.constant 0 : i32
    %c0_i32_0 = arith.constant 0 : i32
    return %c0_i32, %arg1 : i32, i32
  }
  func.func @transform_3(%arg0: i32, %arg1: i32, %arg2: i32) -> (i32, i32) {
    %c0_i32 = arith.constant 0 : i32
    return %arg0, %arg1 : i32, i32
  }
}

module attributes {stable_mosaic.version = 11 : i64} {
  func.func @_ln_linear_kernel(%arg0: i32, %arg1: i32, %arg2: memref<16x32xf32, #tpu.memory_space<vmem>>, %arg3: memref<1x32xf32, #tpu.memory_space<vmem>>, %arg4: memref<1x32xf32, #tpu.memory_space<vmem>>, %arg5: memref<32x96xbf16, #tpu.memory_space<vmem>>, %arg6: memref<1x96xf32, #tpu.memory_space<vmem>>, %arg7: memref<16x96xbf16, #tpu.memory_space<vmem>>, %arg8: memref<16x32xbf16, #tpu.memory_space<vmem>>) attributes {dimension_semantics = [#tpu.dimension_semantics<parallel>, #tpu.dimension_semantics<arbitrary>], iteration_bounds = array<i64: 1, 1>, scalar_prefetch = 0 : i64, scratch_operands = 1 : i64, tpu.core_type = #tpu.core_type<tc>, window_params = [{transform_indices = @transform_0, window_bounds = array<i64: 16, 32>}, {pipeline_mode = #tpu.pipeline_mode<synchronous>, transform_indices = @transform_1, window_bounds = array<i64: 1, 32>}, {pipeline_mode = #tpu.pipeline_mode<synchronous>, transform_indices = @transform_2, window_bounds = array<i64: 1, 32>}, {transform_indices = @transform_3, window_bounds = array<i64: 32, 96>}, {transform_indices = @transform_4, window_bounds = array<i64: 1, 96>}, {transform_indices = @transform_5, window_bounds = array<i64: 16, 96>}]} {
    %c0_i32 = arith.constant 0 : i32
    %0 = arith.cmpi eq, %arg1, %c0_i32 : i32
    %1 = arith.extui %0 : i1 to i32
    %c0_i32_0 = arith.constant 0 : i32
    %2 = arith.cmpi ne, %1, %c0_i32_0 : i32
    scf.if %2 {
      %c0_8 = arith.constant 0 : index
      %c0_9 = arith.constant 0 : index
      %11 = vector.load %arg2[%c0_8, %c0_9] : memref<16x32xf32, #tpu.memory_space<vmem>>, vector<16x32xf32>
      %cst_10 = arith.constant dense<0.000000e+00> : vector<16xf32>
      %12 = vector.multi_reduction <add>, %11, %cst_10 [1] : vector<16x32xf32> to vector<16xf32>
      %13 = vector.shape_cast %12 : vector<16xf32> to vector<16x1xf32>
      %cst_11 = arith.constant 3.200000e+01 : f32
      %14 = vector.broadcast %cst_11 : f32 to vector<16x1xf32>
      %15 = arith.divf %13, %14 : vector<16x1xf32>
      %16 = vector.broadcast %15 : vector<16x1xf32> to vector<16x32xf32>
      %17 = arith.subf %11, %16 : vector<16x32xf32>
      %18 = arith.mulf %17, %17 : vector<16x32xf32>
      %cst_12 = arith.constant dense<0.000000e+00> : vector<16xf32>
      %19 = vector.multi_reduction <add>, %18, %cst_12 [1] : vector<16x32xf32> to vector<16xf32>
      %20 = vector.shape_cast %19 : vector<16xf32> to vector<16x1xf32>
      %cst_13 = arith.constant 3.200000e+01 : f32
      %21 = vector.broadcast %cst_13 : f32 to vector<16x1xf32>
      %22 = arith.divf %20, %21 : vector<16x1xf32>
      %cst_14 = arith.constant 9.99999997E-7 : f32
      %23 = vector.broadcast %cst_14 : f32 to vector<16x1xf32>
      %24 = arith.addf %22, %23 : vector<16x1xf32>
      %25 = math.rsqrt %24 : vector<16x1xf32>
      %26 = vector.broadcast %25 : vector<16x1xf32> to vector<16x32xf32>
      %27 = arith.mulf %17, %26 : vector<16x32xf32>
      %c0_15 = arith.constant 0 : index
      %c0_16 = arith.constant 0 : index
      %28 = vector.load %arg3[%c0_15, %c0_16] : memref<1x32xf32, #tpu.memory_space<vmem>>, vector<1x32xf32>
      %29 = vector.broadcast %28 : vector<1x32xf32> to vector<16x32xf32>
      %30 = arith.mulf %27, %29 : vector<16x32xf32>
      %c0_17 = arith.constant 0 : index
      %c0_18 = arith.constant 0 : index
      %31 = vector.load %arg4[%c0_17, %c0_18] : memref<1x32xf32, #tpu.memory_space<vmem>>, vector<1x32xf32>
      %32 = vector.broadcast %31 : vector<1x32xf32> to vector<16x32xf32>
      %33 = arith.addf %30, %32 : vector<16x32xf32>
      %34 = arith.truncf %33 : vector<16x32xf32> to vector<16x32xbf16>
      %c0_19 = arith.constant 0 : index
      %c0_20 = arith.constant 0 : index
      %35 = vector.load %arg8[%c0_19, %c0_20] : memref<16x32xbf16, #tpu.memory_space<vmem>>, vector<16x32xbf16>
      tpu.vector_store %arg8[%c0_19, %c0_20], %34 {strides = array<i32>} : memref<16x32xbf16, #tpu.memory_space<vmem>>, vector<16x32xbf16>,
    } else {
    }
    %c0 = arith.constant 0 : index
    %c0_1 = arith.constant 0 : index
    %3 = vector.load %arg8[%c0, %c0_1] : memref<16x32xbf16, #tpu.memory_space<vmem>>, vector<16x32xbf16>
    %c0_2 = arith.constant 0 : index
    %c0_3 = arith.constant 0 : index
    %4 = vector.load %arg5[%c0_2, %c0_3] : memref<32x96xbf16, #tpu.memory_space<vmem>>, vector<32x96xbf16>
    %cst = arith.constant dense<0.000000e+00> : vector<16x96xf32>
    %5 = tpu.matmul %3, %4, %cst {dimension_numbers = #tpu.dot_dimension_numbers<[1], [0], [0], [1], [0, 0, 1, 1], [], []>} : vector<16x32xbf16>, vector<32x96xbf16>, vector<16x96xf32> -> vector<16x96xf32>
    %c0_4 = arith.constant 0 : index
    %c0_5 = arith.constant 0 : index
    %6 = vector.load %arg6[%c0_4, %c0_5] : memref<1x96xf32, #tpu.memory_space<vmem>>, vector<1x96xf32>
    %7 = vector.broadcast %6 : vector<1x96xf32> to vector<16x96xf32>
    %8 = arith.addf %5, %7 : vector<16x96xf32>
    %9 = arith.truncf %8 : vector<16x96xf32> to vector<16x96xbf16>
    %c0_6 = arith.constant 0 : index
    %c0_7 = arith.constant 0 : index
    %10 = vector.load %arg7[%c0_6, %c0_7] : memref<16x96xbf16, #tpu.memory_space<vmem>>, vector<16x96xbf16>
    tpu.vector_store %arg7[%c0_6, %c0_7], %9 {strides = array<i32>} : memref<16x96xbf16, #tpu.memory_space<vmem>>, vector<16x96xbf16>,
    return
  }
  func.func @transform_0(%arg0: i32, %arg1: i32) -> (i32, i32) {
    %c0_i32 = arith.constant 0 : i32
    %c0_i32_0 = arith.constant 0 : i32
    return %arg0, %c0_i32 : i32, i32
  }
  func.func @transform_1(%arg0: i32, %arg1: i32) -> (i32, i32) {
    %c0_i32 = arith.constant 0 : i32
    %c0_i32_0 = arith.constant 0 : i32
    %c0_i32_1 = arith.constant 0 : i32
    return %c0_i32, %c0_i32_0 : i32, i32
  }
  func.func @transform_2(%arg0: i32, %arg1: i32) -> (i32, i32) {
    %c0_i32 = arith.constant 0 : i32
    %c0_i32_0 = arith.constant 0 : i32
    %c0_i32_1 = arith.constant 0 : i32
    return %c0_i32, %c0_i32_0 : i32, i32
  }
  func.func @transform_3(%arg0: i32, %arg1: i32) -> (i32, i32) {
    %c0_i32 = arith.constant 0 : i32
    %c0_i32_0 = arith.constant 0 : i32
    return %c0_i32, %arg1 : i32, i32
  }
  func.func @transform_4(%arg0: i32, %arg1: i32) -> (i32, i32) {
    %c0_i32 = arith.constant 0 : i32
    %c0_i32_0 = arith.constant 0 : i32
    return %c0_i32, %arg1 : i32, i32
  }
  func.func @transform_5(%arg0: i32, %arg1: i32) -> (i32, i32) {
    %c0_i32 = arith.constant 0 : i32
    return %arg0, %arg1 : i32, i32
  }
}

module attributes {stable_mosaic.version = 11 : i64} {
  func.func @_attn_kernel(%arg0: i32, %arg1: i32, %arg2: memref<1x8x16xbf16, #tpu.memory_space<vmem>>, %arg3: memref<1x5x16xbf16, #tpu.memory_space<vmem>>, %arg4: memref<1x5x16xbf16, #tpu.memory_space<vmem>>, %arg5: memref<1x8x16xbf16, #tpu.memory_space<vmem>>) attributes {dimension_semantics = [#tpu.dimension_semantics<parallel>, #tpu.dimension_semantics<parallel>], iteration_bounds = array<i64: 4, 1>, scalar_prefetch = 0 : i64, scratch_operands = 0 : i64, tpu.core_type = #tpu.core_type<tc>, window_params = [{transform_indices = @transform_0, window_bounds = array<i64: 1, 8, 16>}, {transform_indices = @transform_1, window_bounds = array<i64: 1, 5, 16>}, {transform_indices = @transform_2, window_bounds = array<i64: 1, 5, 16>}, {transform_indices = @transform_3, window_bounds = array<i64: 1, 8, 16>}]} {
    %c0 = arith.constant 0 : index
    %c0_0 = arith.constant 0 : index
    %c0_1 = arith.constant 0 : index
    %0 = vector.load %arg2[%c0, %c0_0, %c0_1] : memref<1x8x16xbf16, #tpu.memory_space<vmem>>, vector<1x8x16xbf16>
    %1 = vector.shape_cast %0 : vector<1x8x16xbf16> to vector<8x16xbf16>
    %2 = arith.extf %1 : vector<8x16xbf16> to vector<8x16xf32>
    %cst = arith.constant 2.500000e-01 : f32
    %3 = vector.broadcast %cst : f32 to vector<8x16xf32>
    %4 = arith.mulf %2, %3 : vector<8x16xf32>
    %5 = arith.truncf %4 : vector<8x16xf32> to vector<8x16xbf16>
    %c0_2 = arith.constant 0 : index
    %c0_3 = arith.constant 0 : index
    %c0_4 = arith.constant 0 : index
    %6 = vector.load %arg3[%c0_2, %c0_3, %c0_4] : memref<1x5x16xbf16, #tpu.memory_space<vmem>>, vector<1x5x16xbf16>
    %7 = vector.shape_cast %6 : vector<1x5x16xbf16> to vector<5x16xbf16>
    %c0_5 = arith.constant 0 : index
    %c0_6 = arith.constant 0 : index
    %c0_7 = arith.constant 0 : index
    %8 = vector.load %arg4[%c0_5, %c0_6, %c0_7] : memref<1x5x16xbf16, #tpu.memory_space<vmem>>, vector<1x5x16xbf16>
    %9 = vector.shape_cast %8 : vector<1x5x16xbf16> to vector<5x16xbf16>
    %cst_8 = arith.constant dense<0.000000e+00> : vector<8x5xf32>
    %10 = tpu.matmul %5, %7, %cst_8 {dimension_numbers = #tpu.dot_dimension_numbers<[1], [1], [0], [0], [0, 0, 1, 0], [], []>} : vector<8x16xbf16>, vector<5x16xbf16>, vector<8x5xf32> -> vector<8x5xf32>
    %cst_9 = arith.constant dense<0xFF800000> : vector<8xf32>
    %11 = vector.multi_reduction <maximumf>, %10, %cst_9 [1] : vector<8x5xf32> to vector<8xf32>
    %12 = vector.shape_cast %11 : vector<8xf32> to vector<8x1xf32>
    %13 = vector.broadcast %12 : vector<8x1xf32> to vector<8x5xf32>
    %14 = arith.subf %10, %13 : vector<8x5xf32>
    %15 = math.exp %14 : vector<8x5xf32>
    %cst_10 = arith.constant dense<0.000000e+00> : vector<8xf32>
    %16 = vector.multi_reduction <add>, %15, %cst_10 [1] : vector<8x5xf32> to vector<8xf32>
    %17 = vector.shape_cast %16 : vector<8xf32> to vector<8x1xf32>
    %18 = arith.truncf %15 : vector<8x5xf32> to vector<8x5xbf16>
    %cst_11 = arith.constant dense<0.000000e+00> : vector<8x16xf32>
    %19 = tpu.matmul %18, %9, %cst_11 {dimension_numbers = #tpu.dot_dimension_numbers<[1], [0], [0], [1], [0, 0, 1, 1], [], []>} : vector<8x5xbf16>, vector<5x16xbf16>, vector<8x16xf32> -> vector<8x16xf32>
    %20 = tpu.reciprocal %17 : vector<8x1xf32> -> vector<8x1xf32>
    %21 = vector.broadcast %20 : vector<8x1xf32> to vector<8x16xf32>
    %22 = arith.mulf %19, %21 : vector<8x16xf32>
    %23 = arith.truncf %22 : vector<8x16xf32> to vector<8x16xbf16>
    %c0_12 = arith.constant 0 : index
    %c0_13 = arith.constant 0 : index
    %c0_14 = arith.constant 0 : index
    %24 = vector.load %arg5[%c0_12, %c0_13, %c0_14] : memref<1x8x16xbf16, #tpu.memory_space<vmem>>, vector<1x8x16xbf16>
    %25 = vector.shape_cast %24 : vector<1x8x16xbf16> to vector<8x16xbf16>
    %26 = vector.shape_cast %23 : vector<8x16xbf16> to vector<1x8x16xbf16>
    tpu.vector_store %arg5[%c0_12, %c0_13, %c0_14], %26 {strides = array<i32>} : memref<1x8x16xbf16, #tpu.memory_space<vmem>>, vector<1x8x16xbf16>,
    return
  }
  func.func @transform_0(%arg0: i32, %arg1: i32) -> (i32, i32, i32) {
    %c0_i32 = arith.constant 0 : i32
    %c0_i32_0 = arith.constant 0 : i32
    return %arg0, %arg1, %c0_i32 : i32, i32, i32
  }
  func.func @transform_1(%arg0: i32, %arg1: i32) -> (i32, i32, i32) {
    %c0_i32 = arith.constant 0 : i32
    %c0_i32_0 = arith.constant 0 : i32
    %c0_i32_1 = arith.constant 0 : i32
    return %arg0, %c0_i32, %c0_i32_0 : i32, i32, i32
  }
  func.func @transform_2(%arg0: i32, %arg1: i32) -> (i32, i32, i32) {
    %c0_i32 = arith.constant 0 : i32
    %c0_i32_0 = arith.constant 0 : i32
    %c0_i32_1 = arith.constant 0 : i32
    return %arg0, %c0_i32, %c0_i32_0 : i32, i32, i32
  }
  func.func @transform_3(%arg0: i32, %arg1: i32) -> (i32, i32, i32) {
    %c0_i32 = arith.constant 0 : i32
    %c0_i32_0 = arith.constant 0 : i32
    return %arg0, %arg1, %c0_i32 : i32, i32, i32
  }
}

module attributes {stable_mosaic.version = 11 : i64} {
  func.func @_linear_res_ls_kernel(%arg0: i32, %arg1: i32, %arg2: i32, %arg3: memref<16x32xbf16, #tpu.memory_space<vmem>>, %arg4: memref<32x32xbf16, #tpu.memory_space<vmem>>, %arg5: memref<1x32xf32, #tpu.memory_space<vmem>>, %arg6: memref<1x32xf32, #tpu.memory_space<vmem>>, %arg7: memref<16x32xf32, #tpu.memory_space<vmem>>, %arg8: memref<16x32xf32, #tpu.memory_space<vmem>>, %arg9: memref<16x32xf32, #tpu.memory_space<vmem>>) attributes {dimension_semantics = [#tpu.dimension_semantics<parallel>, #tpu.dimension_semantics<parallel>, #tpu.dimension_semantics<arbitrary>], iteration_bounds = array<i64: 1, 1, 1>, scalar_prefetch = 0 : i64, scratch_operands = 1 : i64, tpu.core_type = #tpu.core_type<tc>, window_params = [{transform_indices = @transform_0, window_bounds = array<i64: 16, 32>}, {transform_indices = @transform_1, window_bounds = array<i64: 32, 32>}, {transform_indices = @transform_2, window_bounds = array<i64: 1, 32>}, {transform_indices = @transform_3, window_bounds = array<i64: 1, 32>}, {transform_indices = @transform_4, window_bounds = array<i64: 16, 32>}, {transform_indices = @transform_5, window_bounds = array<i64: 16, 32>}]} {
    %c0_i32 = arith.constant 0 : i32
    %0 = arith.cmpi eq, %arg2, %c0_i32 : i32
    %1 = arith.extui %0 : i1 to i32
    %c0_i32_0 = arith.constant 0 : i32
    %2 = arith.cmpi ne, %1, %c0_i32_0 : i32
    scf.if %2 {
      %cst_10 = arith.constant 0.000000e+00 : f32
      %12 = vector.broadcast %cst_10 : f32 to vector<16x32xf32>
      %c0_11 = arith.constant 0 : index
      %c0_12 = arith.constant 0 : index
      %13 = vector.load %arg9[%c0_11, %c0_12] : memref<16x32xf32, #tpu.memory_space<vmem>>, vector<16x32xf32>
      tpu.vector_store %arg9[%c0_11, %c0_12], %12 {strides = array<i32>} : memref<16x32xf32, #tpu.memory_space<vmem>>, vector<16x32xf32>,
    } else {
    }
    %c0 = arith.constant 0 : index
    %c0_1 = arith.constant 0 : index
    %3 = vector.load %arg9[%c0, %c0_1] : memref<16x32xf32, #tpu.memory_space<vmem>>, vector<16x32xf32>
    %c0_2 = arith.constant 0 : index
    %c0_3 = arith.constant 0 : index
    %4 = vector.load %arg3[%c0_2, %c0_3] : memref<16x32xbf16, #tpu.memory_space<vmem>>, vector<16x32xbf16>
    %c0_4 = arith.constant 0 : index
    %c0_5 = arith.constant 0 : index
    %5 = vector.load %arg4[%c0_4, %c0_5] : memref<32x32xbf16, #tpu.memory_space<vmem>>, vector<32x32xbf16>
    %cst = arith.constant dense<0.000000e+00> : vector<16x32xf32>
    %6 = tpu.matmul %4, %5, %cst {dimension_numbers = #tpu.dot_dimension_numbers<[1], [0], [0], [1], [0, 0, 1, 1], [], []>} : vector<16x32xbf16>, vector<32x32xbf16>, vector<16x32xf32> -> vector<16x32xf32>
    %7 = arith.addf %3, %6 : vector<16x32xf32>
    %c0_6 = arith.constant 0 : index
    %c0_7 = arith.constant 0 : index
    %8 = vector.load %arg9[%c0_6, %c0_7] : memref<16x32xf32, #tpu.memory_space<vmem>>, vector<16x32xf32>
    tpu.vector_store %arg9[%c0_6, %c0_7], %7 {strides = array<i32>} : memref<16x32xf32, #tpu.memory_space<vmem>>, vector<16x32xf32>,
    %c0_i32_8 = arith.constant 0 : i32
    %9 = arith.cmpi eq, %arg2, %c0_i32_8 : i32
    %10 = arith.extui %9 : i1 to i32
    %c0_i32_9 = arith.constant 0 : i32
    %11 = arith.cmpi ne, %10, %c0_i32_9 : i32
    scf.if %11 {
      %c0_10 = arith.constant 0 : index
      %c0_11 = arith.constant 0 : index
      %12 = vector.load %arg7[%c0_10, %c0_11] : memref<16x32xf32, #tpu.memory_space<vmem>>, vector<16x32xf32>
      %c0_12 = arith.constant 0 : index
      %c0_13 = arith.constant 0 : index
      %13 = vector.load %arg6[%c0_12, %c0_13] : memref<1x32xf32, #tpu.memory_space<vmem>>, vector<1x32xf32>
      %c0_14 = arith.constant 0 : index
      %c0_15 = arith.constant 0 : index
      %14 = vector.load %arg9[%c0_14, %c0_15] : memref<16x32xf32, #tpu.memory_space<vmem>>, vector<16x32xf32>
      %c0_16 = arith.constant 0 : index
      %c0_17 = arith.constant 0 : index
      %15 = vector.load %arg5[%c0_16, %c0_17] : memref<1x32xf32, #tpu.memory_space<vmem>>, vector<1x32xf32>
      %16 = vector.broadcast %15 : vector<1x32xf32> to vector<16x32xf32>
      %17 = arith.addf %14, %16 : vector<16x32xf32>
      %18 = vector.broadcast %13 : vector<1x32xf32> to vector<16x32xf32>
      %19 = arith.mulf %18, %17 : vector<16x32xf32>
      %20 = arith.addf %12, %19 : vector<16x32xf32>
      %c0_18 = arith.constant 0 : index
      %c0_19 = arith.constant 0 : index
      %21 = vector.load %arg8[%c0_18, %c0_19] : memref<16x32xf32, #tpu.memory_space<vmem>>, vector<16x32xf32>
      tpu.vector_store %arg8[%c0_18, %c0_19], %20 {strides = array<i32>} : memref<16x32xf32, #tpu.memory_space<vmem>>, vector<16x32xf32>,
    } else {
    }
    return
  }
  func.func @transform_0(%arg0: i32, %arg1: i32, %arg2: i32) -> (i32, i32) {
    %c0_i32 = arith.constant 0 : i32
    return %arg0, %arg2 : i32, i32
  }
  func.func @transform_1(%arg0: i32, %arg1: i32, %arg2: i32) -> (i32, i32) {
    %c0_i32 = arith.constant 0 : i32
    return %arg2, %arg1 : i32, i32
  }
  func.func @transform_2(%arg0: i32, %arg1: i32, %arg2: i32) -> (i32, i32) {
    %c0_i32 = arith.constant 0 : i32
    %c0_i32_0 = arith.constant 0 : i32
    return %c0_i32, %arg1 : i32, i32
  }
  func.func @transform_3(%arg0: i32, %arg1: i32, %arg2: i32) -> (i32, i32) {
    %c0_i32 = arith.constant 0 : i32
    %c0_i32_0 = arith.constant 0 : i32
    return %c0_i32, %arg1 : i32, i32
  }
  func.func @transform_4(%arg0: i32, %arg1: i32, %arg2: i32) -> (i32, i32) {
    %c0_i32 = arith.constant 0 : i32
    return %arg0, %arg1 : i32, i32
  }
  func.func @transform_5(%arg0: i32, %arg1: i32, %arg2: i32) -> (i32, i32) {
    %c0_i32 = arith.constant 0 : i32
    return %arg0, %arg1 : i32, i32
  }
}

module attributes {stable_mosaic.version = 11 : i64} {
  func.func @_ln_linear_kernel(%arg0: i32, %arg1: i32, %arg2: memref<16x32xf32, #tpu.memory_space<vmem>>, %arg3: memref<1x32xf32, #tpu.memory_space<vmem>>, %arg4: memref<1x32xf32, #tpu.memory_space<vmem>>, %arg5: memref<32x128xbf16, #tpu.memory_space<vmem>>, %arg6: memref<1x128xf32, #tpu.memory_space<vmem>>, %arg7: memref<16x128xbf16, #tpu.memory_space<vmem>>, %arg8: memref<16x32xbf16, #tpu.memory_space<vmem>>) attributes {dimension_semantics = [#tpu.dimension_semantics<parallel>, #tpu.dimension_semantics<arbitrary>], iteration_bounds = array<i64: 1, 1>, scalar_prefetch = 0 : i64, scratch_operands = 1 : i64, tpu.core_type = #tpu.core_type<tc>, window_params = [{transform_indices = @transform_0, window_bounds = array<i64: 16, 32>}, {pipeline_mode = #tpu.pipeline_mode<synchronous>, transform_indices = @transform_1, window_bounds = array<i64: 1, 32>}, {pipeline_mode = #tpu.pipeline_mode<synchronous>, transform_indices = @transform_2, window_bounds = array<i64: 1, 32>}, {transform_indices = @transform_3, window_bounds = array<i64: 32, 128>}, {transform_indices = @transform_4, window_bounds = array<i64: 1, 128>}, {transform_indices = @transform_5, window_bounds = array<i64: 16, 128>}]} {
    %c0_i32 = arith.constant 0 : i32
    %0 = arith.cmpi eq, %arg1, %c0_i32 : i32
    %1 = arith.extui %0 : i1 to i32
    %c0_i32_0 = arith.constant 0 : i32
    %2 = arith.cmpi ne, %1, %c0_i32_0 : i32
    scf.if %2 {
      %c0_24 = arith.constant 0 : index
      %c0_25 = arith.constant 0 : index
      %52 = vector.load %arg2[%c0_24, %c0_25] : memref<16x32xf32, #tpu.memory_space<vmem>>, vector<16x32xf32>
      %cst_26 = arith.constant dense<0.000000e+00> : vector<16xf32>
      %53 = vector.multi_reduction <add>, %52, %cst_26 [1] : vector<16x32xf32> to vector<16xf32>
      %54 = vector.shape_cast %53 : vector<16xf32> to vector<16x1xf32>
      %cst_27 = arith.constant 3.200000e+01 : f32
      %55 = vector.broadcast %cst_27 : f32 to vector<16x1xf32>
      %56 = arith.divf %54, %55 : vector<16x1xf32>
      %57 = vector.broadcast %56 : vector<16x1xf32> to vector<16x32xf32>
      %58 = arith.subf %52, %57 : vector<16x32xf32>
      %59 = arith.mulf %58, %58 : vector<16x32xf32>
      %cst_28 = arith.constant dense<0.000000e+00> : vector<16xf32>
      %60 = vector.multi_reduction <add>, %59, %cst_28 [1] : vector<16x32xf32> to vector<16xf32>
      %61 = vector.shape_cast %60 : vector<16xf32> to vector<16x1xf32>
      %cst_29 = arith.constant 3.200000e+01 : f32
      %62 = vector.broadcast %cst_29 : f32 to vector<16x1xf32>
      %63 = arith.divf %61, %62 : vector<16x1xf32>
      %cst_30 = arith.constant 9.99999997E-7 : f32
      %64 = vector.broadcast %cst_30 : f32 to vector<16x1xf32>
      %65 = arith.addf %63, %64 : vector<16x1xf32>
      %66 = math.rsqrt %65 : vector<16x1xf32>
      %67 = vector.broadcast %66 : vector<16x1xf32> to vector<16x32xf32>
      %68 = arith.mulf %58, %67 : vector<16x32xf32>
      %c0_31 = arith.constant 0 : index
      %c0_32 = arith.constant 0 : index
      %69 = vector.load %arg3[%c0_31, %c0_32] : memref<1x32xf32, #tpu.memory_space<vmem>>, vector<1x32xf32>
      %70 = vector.broadcast %69 : vector<1x32xf32> to vector<16x32xf32>
      %71 = arith.mulf %68, %70 : vector<16x32xf32>
      %c0_33 = arith.constant 0 : index
      %c0_34 = arith.constant 0 : index
      %72 = vector.load %arg4[%c0_33, %c0_34] : memref<1x32xf32, #tpu.memory_space<vmem>>, vector<1x32xf32>
      %73 = vector.broadcast %72 : vector<1x32xf32> to vector<16x32xf32>
      %74 = arith.addf %71, %73 : vector<16x32xf32>
      %75 = arith.truncf %74 : vector<16x32xf32> to vector<16x32xbf16>
      %c0_35 = arith.constant 0 : index
      %c0_36 = arith.constant 0 : index
      %76 = vector.load %arg8[%c0_35, %c0_36] : memref<16x32xbf16, #tpu.memory_space<vmem>>, vector<16x32xbf16>
      tpu.vector_store %arg8[%c0_35, %c0_36], %75 {strides = array<i32>} : memref<16x32xbf16, #tpu.memory_space<vmem>>, vector<16x32xbf16>,
    } else {
    }
    %c0 = arith.constant 0 : index
    %c0_1 = arith.constant 0 : index
    %3 = vector.load %arg8[%c0, %c0_1] : memref<16x32xbf16, #tpu.memory_space<vmem>>, vector<16x32xbf16>
    %c0_2 = arith.constant 0 : index
    %c0_3 = arith.constant 0 : index
    %4 = vector.load %arg5[%c0_2, %c0_3] : memref<32x128xbf16, #tpu.memory_space<vmem>>, vector<32x128xbf16>
    %cst = arith.constant dense<0.000000e+00> : vector<16x128xf32>
    %5 = tpu.matmul %3, %4, %cst {dimension_numbers = #tpu.dot_dimension_numbers<[1], [0], [0], [1], [0, 0, 1, 1], [], []>} : vector<16x32xbf16>, vector<32x128xbf16>, vector<16x128xf32> -> vector<16x128xf32>
    %c0_4 = arith.constant 0 : index
    %c0_5 = arith.constant 0 : index
    %6 = vector.load %arg6[%c0_4, %c0_5] : memref<1x128xf32, #tpu.memory_space<vmem>>, vector<1x128xf32>
    %7 = vector.broadcast %6 : vector<1x128xf32> to vector<16x128xf32>
    %8 = arith.addf %5, %7 : vector<16x128xf32>
    %cst_6 = arith.constant 5.000000e-01 : f32
    %9 = vector.broadcast %cst_6 : f32 to vector<16x128xf32>
    %10 = arith.mulf %9, %8 : vector<16x128xf32>
    %cst_7 = arith.constant 0.707106769 : f32
    %11 = vector.broadcast %cst_7 : f32 to vector<16x128xf32>
    %12 = arith.mulf %8, %11 : vector<16x128xf32>
    %cst_8 = arith.constant 0.000000e+00 : f32
    %13 = vector.broadcast %cst_8 : f32 to vector<16x128xf32>
    %14 = arith.cmpf olt, %12, %13 : vector<16x128xf32>
    %cst_9 = arith.constant -1.000000e+00 : f32
    %cst_10 = arith.constant 1.000000e+00 : f32
    %15 = vector.broadcast %cst_9 : f32 to vector<16x128xf32>
    %16 = vector.broadcast %cst_10 : f32 to vector<16x128xf32>
    %17 = arith.select %14, %15, %16 : vector<16x128xi1>, vector<16x128xf32>
    %18 = math.absf %12 : vector<16x128xf32>
    %cst_11 = arith.constant 0.327591091 : f32
    %19 = vector.broadcast %cst_11 : f32 to vector<16x128xf32>
    %20 = arith.mulf %19, %18 : vector<16x128xf32>
    %cst_12 = arith.constant 1.000000e+00 : f32
    %21 = vector.broadcast %cst_12 : f32 to vector<16x128xf32>
    %22 = arith.addf %21, %20 : vector<16x128xf32>
    %cst_13 = arith.constant 1.000000e+00 : f32
    %23 = vector.broadcast %cst_13 : f32 to vector<16x128xf32>
    %24 = arith.divf %23, %22 : vector<16x128xf32>
    %cst_14 = arith.constant 1.06140542 : f32
    %25 = vector.broadcast %cst_14 : f32 to vector<16x128xf32>
    %26 = arith.mulf %25, %24 : vector<16x128xf32>
    %cst_15 = arith.constant -1.45315206 : f32
    %27 = vector.broadcast %cst_15 : f32 to vector<16x128xf32>
    %28 = arith.addf %26, %27 : vector<16x128xf32>
    %29 = arith.mulf %28, %24 : vector<16x128xf32>
    %cst_16 = arith.constant 1.42141378 : f32
    %30 = vector.broadcast %cst_16 : f32 to vector<16x128xf32>
    %31 = arith.addf %29, %30 : vector<16x128xf32>
    %32 = arith.mulf %31, %24 : vector<16x128xf32>
    %cst_17 = arith.constant -0.284496725 : f32
    %33 = vector.broadcast %cst_17 : f32 to vector<16x128xf32>
    %34 = arith.addf %32, %33 : vector<16x128xf32>
    %35 = arith.mulf %34, %24 : vector<16x128xf32>
    %cst_18 = arith.constant 0.254829586 : f32
    %36 = vector.broadcast %cst_18 : f32 to vector<16x128xf32>
    %37 = arith.addf %35, %36 : vector<16x128xf32>
    %38 = arith.mulf %37, %24 : vector<16x128xf32>
    %cst_19 = arith.constant 0.000000e+00 : f32
    %39 = vector.broadcast %cst_19 : f32 to vector<16x128xf32>
    %40 = arith.subf %39, %18 : vector<16x128xf32>
    %41 = arith.mulf %40, %18 : vector<16x128xf32>
    %42 = math.exp %41 : vector<16x128xf32>
    %43 = arith.mulf %38, %42 : vector<16x128xf32>
    %cst_20 = arith.constant 1.000000e+00 : f32
    %44 = vector.broadcast %cst_20 : f32 to vector<16x128xf32>
    %45 = arith.subf %44, %43 : vector<16x128xf32>
    %46 = arith.mulf %17, %45 : vector<16x128xf32>
    %cst_21 = arith.constant 1.000000e+00 : f32
    %47 = vector.broadcast %cst_21 : f32 to vector<16x128xf32>
    %48 = arith.addf %47, %46 : vector<16x128xf32>
    %49 = arith.mulf %10, %48 : vector<16x128xf32>
    %50 = arith.truncf %49 : vector<16x128xf32> to vector<16x128xbf16>
    %c0_22 = arith.constant 0 : index
    %c0_23 = arith.constant 0 : index
    %51 = vector.load %arg7[%c0_22, %c0_23] : memref<16x128xbf16, #tpu.memory_space<vmem>>, vector<16x128xbf16>
    tpu.vector_store %arg7[%c0_22, %c0_23], %50 {strides = array<i32>} : memref<16x128xbf16, #tpu.memory_space<vmem>>, vector<16x128xbf16>,
    return
  }
  func.func @transform_0(%arg0: i32, %arg1: i32) -> (i32, i32) {
    %c0_i32 = arith.constant 0 : i32
    %c0_i32_0 = arith.constant 0 : i32
    return %arg0, %c0_i32 : i32, i32
  }
  func.func @transform_1(%arg0: i32, %arg1: i32) -> (i32, i32) {
    %c0_i32 = arith.constant 0 : i32
    %c0_i32_0 = arith.constant 0 : i32
    %c0_i32_1 = arith.constant 0 : i32
    return %c0_i32, %c0_i32_0 : i32, i32
  }
  func.func @transform_2(%arg0: i32, %arg1: i32) -> (i32, i32) {
    %c0_i32 = arith.constant 0 : i32
    %c0_i32_0 = arith.constant 0 : i32
    %c0_i32_1 = arith.constant 0 : i32
    return %c0_i32, %c0_i32_0 : i32, i32
  }
  func.func @transform_3(%arg0: i32, %arg1: i32) -> (i32, i32) {
    %c0_i32 = arith.constant 0 : i32
    %c0_i32_0 = arith.constant 0 : i32
    return %c0_i32, %arg1 : i32, i32
  }
  func.func @transform_4(%arg0: i32, %arg1: i32) -> (i32, i32) {
    %c0_i32 = arith.constant 0 : i32
    %c0_i32_0 = arith.constant 0 : i32
    return %c0_i32, %arg1 : i32, i32
  }
  func.func @transform_5(%arg0: i32, %arg1: i32) -> (i32, i32) {
    %c0_i32 = arith.constant 0 : i32
    return %arg0, %arg1 : i32, i32
  }
}

module attributes {stable_mosaic.version = 11 : i64} {
  func.func @_linear_res_ls_kernel(%arg0: i32, %arg1: i32, %arg2: i32, %arg3: memref<16x128xbf16, #tpu.memory_space<vmem>>, %arg4: memref<128x32xbf16, #tpu.memory_space<vmem>>, %arg5: memref<1x32xf32, #tpu.memory_space<vmem>>, %arg6: memref<1x32xf32, #tpu.memory_space<vmem>>, %arg7: memref<16x32xf32, #tpu.memory_space<vmem>>, %arg8: memref<16x32xf32, #tpu.memory_space<vmem>>, %arg9: memref<16x32xf32, #tpu.memory_space<vmem>>) attributes {dimension_semantics = [#tpu.dimension_semantics<parallel>, #tpu.dimension_semantics<parallel>, #tpu.dimension_semantics<arbitrary>], iteration_bounds = array<i64: 1, 1, 1>, scalar_prefetch = 0 : i64, scratch_operands = 1 : i64, tpu.core_type = #tpu.core_type<tc>, window_params = [{transform_indices = @transform_0, window_bounds = array<i64: 16, 128>}, {transform_indices = @transform_1, window_bounds = array<i64: 128, 32>}, {transform_indices = @transform_2, window_bounds = array<i64: 1, 32>}, {transform_indices = @transform_3, window_bounds = array<i64: 1, 32>}, {transform_indices = @transform_4, window_bounds = array<i64: 16, 32>}, {transform_indices = @transform_5, window_bounds = array<i64: 16, 32>}]} {
    %c0_i32 = arith.constant 0 : i32
    %0 = arith.cmpi eq, %arg2, %c0_i32 : i32
    %1 = arith.extui %0 : i1 to i32
    %c0_i32_0 = arith.constant 0 : i32
    %2 = arith.cmpi ne, %1, %c0_i32_0 : i32
    scf.if %2 {
      %cst_10 = arith.constant 0.000000e+00 : f32
      %12 = vector.broadcast %cst_10 : f32 to vector<16x32xf32>
      %c0_11 = arith.constant 0 : index
      %c0_12 = arith.constant 0 : index
      %13 = vector.load %arg9[%c0_11, %c0_12] : memref<16x32xf32, #tpu.memory_space<vmem>>, vector<16x32xf32>
      tpu.vector_store %arg9[%c0_11, %c0_12], %12 {strides = array<i32>} : memref<16x32xf32, #tpu.memory_space<vmem>>, vector<16x32xf32>,
    } else {
    }
    %c0 = arith.constant 0 : index
    %c0_1 = arith.constant 0 : index
    %3 = vector.load %arg9[%c0, %c0_1] : memref<16x32xf32, #tpu.memory_space<vmem>>, vector<16x32xf32>
    %c0_2 = arith.constant 0 : index
    %c0_3 = arith.constant 0 : index
    %4 = vector.load %arg3[%c0_2, %c0_3] : memref<16x128xbf16, #tpu.memory_space<vmem>>, vector<16x128xbf16>
    %c0_4 = arith.constant 0 : index
    %c0_5 = arith.constant 0 : index
    %5 = vector.load %arg4[%c0_4, %c0_5] : memref<128x32xbf16, #tpu.memory_space<vmem>>, vector<128x32xbf16>
    %cst = arith.constant dense<0.000000e+00> : vector<16x32xf32>
    %6 = tpu.matmul %4, %5, %cst {dimension_numbers = #tpu.dot_dimension_numbers<[1], [0], [0], [1], [0, 0, 1, 1], [], []>} : vector<16x128xbf16>, vector<128x32xbf16>, vector<16x32xf32> -> vector<16x32xf32>
    %7 = arith.addf %3, %6 : vector<16x32xf32>
    %c0_6 = arith.constant 0 : index
    %c0_7 = arith.constant 0 : index
    %8 = vector.load %arg9[%c0_6, %c0_7] : memref<16x32xf32, #tpu.memory_space<vmem>>, vector<16x32xf32>
    tpu.vector_store %arg9[%c0_6, %c0_7], %7 {strides = array<i32>} : memref<16x32xf32, #tpu.memory_space<vmem>>, vector<16x32xf32>,
    %c0_i32_8 = arith.constant 0 : i32
    %9 = arith.cmpi eq, %arg2, %c0_i32_8 : i32
    %10 = arith.extui %9 : i1 to i32
    %c0_i32_9 = arith.constant 0 : i32
    %11 = arith.cmpi ne, %10, %c0_i32_9 : i32
    scf.if %11 {
      %c0_10 = arith.constant 0 : index
      %c0_11 = arith.constant 0 : index
      %12 = vector.load %arg7[%c0_10, %c0_11] : memref<16x32xf32, #tpu.memory_space<vmem>>, vector<16x32xf32>
      %c0_12 = arith.constant 0 : index
      %c0_13 = arith.constant 0 : index
      %13 = vector.load %arg6[%c0_12, %c0_13] : memref<1x32xf32, #tpu.memory_space<vmem>>, vector<1x32xf32>
      %c0_14 = arith.constant 0 : index
      %c0_15 = arith.constant 0 : index
      %14 = vector.load %arg9[%c0_14, %c0_15] : memref<16x32xf32, #tpu.memory_space<vmem>>, vector<16x32xf32>
      %c0_16 = arith.constant 0 : index
      %c0_17 = arith.constant 0 : index
      %15 = vector.load %arg5[%c0_16, %c0_17] : memref<1x32xf32, #tpu.memory_space<vmem>>, vector<1x32xf32>
      %16 = vector.broadcast %15 : vector<1x32xf32> to vector<16x32xf32>
      %17 = arith.addf %14, %16 : vector<16x32xf32>
      %18 = vector.broadcast %13 : vector<1x32xf32> to vector<16x32xf32>
      %19 = arith.mulf %18, %17 : vector<16x32xf32>
      %20 = arith.addf %12, %19 : vector<16x32xf32>
      %c0_18 = arith.constant 0 : index
      %c0_19 = arith.constant 0 : index
      %21 = vector.load %arg8[%c0_18, %c0_19] : memref<16x32xf32, #tpu.memory_space<vmem>>, vector<16x32xf32>
      tpu.vector_store %arg8[%c0_18, %c0_19], %20 {strides = array<i32>} : memref<16x32xf32, #tpu.memory_space<vmem>>, vector<16x32xf32>,
    } else {
    }
    return
  }
  func.func @transform_0(%arg0: i32, %arg1: i32, %arg2: i32) -> (i32, i32) {
    %c0_i32 = arith.constant 0 : i32
    return %arg0, %arg2 : i32, i32
  }
  func.func @transform_1(%arg0: i32, %arg1: i32, %arg2: i32) -> (i32, i32) {
    %c0_i32 = arith.constant 0 : i32
    return %arg2, %arg1 : i32, i32
  }
  func.func @transform_2(%arg0: i32, %arg1: i32, %arg2: i32) -> (i32, i32) {
    %c0_i32 = arith.constant 0 : i32
    %c0_i32_0 = arith.constant 0 : i32
    return %c0_i32, %arg1 : i32, i32
  }
  func.func @transform_3(%arg0: i32, %arg1: i32, %arg2: i32) -> (i32, i32) {
    %c0_i32 = arith.constant 0 : i32
    %c0_i32_0 = arith.constant 0 : i32
    return %c0_i32, %arg1 : i32, i32
  }
  func.func @transform_4(%arg0: i32, %arg1: i32, %arg2: i32) -> (i32, i32) {
    %c0_i32 = arith.constant 0 : i32
    return %arg0, %arg1 : i32, i32
  }
  func.func @transform_5(%arg0: i32, %arg1: i32, %arg2: i32) -> (i32, i32) {
    %c0_i32 = arith.constant 0 : i32
    return %arg0, %arg1 : i32, i32
  }
}

module attributes {stable_mosaic.version = 11 : i64} {
  func.func @_layernorm_kernel(%arg0: i32, %arg1: memref<16x32xf32, #tpu.memory_space<vmem>>, %arg2: memref<1x32xf32, #tpu.memory_space<vmem>>, %arg3: memref<1x32xf32, #tpu.memory_space<vmem>>, %arg4: memref<16x32xf32, #tpu.memory_space<vmem>>) attributes {dimension_semantics = [#tpu.dimension_semantics<parallel>], iteration_bounds = array<i64: 1>, scalar_prefetch = 0 : i64, scratch_operands = 0 : i64, tpu.core_type = #tpu.core_type<tc>, window_params = [{transform_indices = @transform_0, window_bounds = array<i64: 16, 32>}, {pipeline_mode = #tpu.pipeline_mode<synchronous>, transform_indices = @transform_1, window_bounds = array<i64: 1, 32>}, {pipeline_mode = #tpu.pipeline_mode<synchronous>, transform_indices = @transform_2, window_bounds = array<i64: 1, 32>}, {transform_indices = @transform_3, window_bounds = array<i64: 16, 32>}]} {
    %c0 = arith.constant 0 : index
    %c0_0 = arith.constant 0 : index
    %0 = vector.load %arg1[%c0, %c0_0] : memref<16x32xf32, #tpu.memory_space<vmem>>, vector<16x32xf32>
    %cst = arith.constant dense<0.000000e+00> : vector<16xf32>
    %1 = vector.multi_reduction <add>, %0, %cst [1] : vector<16x32xf32> to vector<16xf32>
    %2 = vector.shape_cast %1 : vector<16xf32> to vector<16x1xf32>
    %cst_1 = arith.constant 3.200000e+01 : f32
    %3 = vector.broadcast %cst_1 : f32 to vector<16x1xf32>
    %4 = arith.divf %2, %3 : vector<16x1xf32>
    %5 = vector.broadcast %4 : vector<16x1xf32> to vector<16x32xf32>
    %6 = arith.subf %0, %5 : vector<16x32xf32>
    %7 = arith.mulf %6, %6 : vector<16x32xf32>
    %cst_2 = arith.constant dense<0.000000e+00> : vector<16xf32>
    %8 = vector.multi_reduction <add>, %7, %cst_2 [1] : vector<16x32xf32> to vector<16xf32>
    %9 = vector.shape_cast %8 : vector<16xf32> to vector<16x1xf32>
    %cst_3 = arith.constant 3.200000e+01 : f32
    %10 = vector.broadcast %cst_3 : f32 to vector<16x1xf32>
    %11 = arith.divf %9, %10 : vector<16x1xf32>
    %cst_4 = arith.constant 9.99999997E-7 : f32
    %12 = vector.broadcast %cst_4 : f32 to vector<16x1xf32>
    %13 = arith.addf %11, %12 : vector<16x1xf32>
    %14 = math.rsqrt %13 : vector<16x1xf32>
    %15 = vector.broadcast %14 : vector<16x1xf32> to vector<16x32xf32>
    %16 = arith.mulf %6, %15 : vector<16x32xf32>
    %c0_5 = arith.constant 0 : index
    %c0_6 = arith.constant 0 : index
    %17 = vector.load %arg2[%c0_5, %c0_6] : memref<1x32xf32, #tpu.memory_space<vmem>>, vector<1x32xf32>
    %18 = vector.broadcast %17 : vector<1x32xf32> to vector<16x32xf32>
    %19 = arith.mulf %16, %18 : vector<16x32xf32>
    %c0_7 = arith.constant 0 : index
    %c0_8 = arith.constant 0 : index
    %20 = vector.load %arg3[%c0_7, %c0_8] : memref<1x32xf32, #tpu.memory_space<vmem>>, vector<1x32xf32>
    %21 = vector.broadcast %20 : vector<1x32xf32> to vector<16x32xf32>
    %22 = arith.addf %19, %21 : vector<16x32xf32>
    %c0_9 = arith.constant 0 : index
    %c0_10 = arith.constant 0 : index
    %23 = vector.load %arg4[%c0_9, %c0_10] : memref<16x32xf32, #tpu.memory_space<vmem>>, vector<16x32xf32>
    tpu.vector_store %arg4[%c0_9, %c0_10], %22 {strides = array<i32>} : memref<16x32xf32, #tpu.memory_space<vmem>>, vector<16x32xf32>,
    return
  }
  func.func @transform_0(%arg0: i32) -> (i32, i32) {
    %c0_i32 = arith.constant 0 : i32
    %c0_i32_0 = arith.constant 0 : i32
    return %arg0, %c0_i32 : i32, i32
  }
  func.func @transform_1(%arg0: i32) -> (i32, i32) {
    %c0_i32 = arith.constant 0 : i32
    %c0_i32_0 = arith.constant 0 : i32
    %c0_i32_1 = arith.constant 0 : i32
    return %c0_i32, %c0_i32_0 : i32, i32
  }
  func.func @transform_2(%arg0: i32) -> (i32, i32) {
    %c0_i32 = arith.constant 0 : i32
    %c0_i32_0 = arith.constant 0 : i32
    %c0_i32_1 = arith.constant 0 : i32
    return %c0_i32, %c0_i32_0 : i32, i32
  }
  func.func @transform_3(%arg0: i32) -> (i32, i32) {
    %c0_i32 = arith.constant 0 : i32
    %c0_i32_0 = arith.constant 0 : i32
    return %arg0, %c0_i32 : i32, i32
  }
}

</mosaic_0001>

<llo_original>
// kernel: dinov2_feature_extractor.14
$region0: #{dinov2_feature_extractor.14}
  #allocation0 [shape = 'u32[]', space=smem, size = 0x4, offset = 0x4, fixed_abs, tag = 'smem constant byte address 0x4 - core index']
  #allocation1 [shape = 'u32[144,128]{1,0:T(1,128)}', space=vmem, size = 0x12000, scoped, tag = 'internal scratch']
  %s0 = inlined_call_operand.vmem [shape: bf16[4,8,16], index: 0, kind: input, shape index: {}]
  %s1 = inlined_call_operand.vmem [shape: bf16[4,5,16], index: 1, kind: input, shape index: {}]
  %s2 = inlined_call_operand.vmem [shape: bf16[4,5,16], index: 2, kind: input, shape index: {}]
  %s3 = inlined_call_operand.vmem [shape: bf16[4,8,16], index: 3, kind: output, shape index: {}]
  %s4 = sld [smem:[#allocation0]]
  $region45: #{dinov2_feature_extractor.14} parent=0
    _
  %s6 = ssub.s32 1, %s4
  %s7 = scalar_select 0, %s6, %s4
  loop: start=0, step=1, limit=6
  $region2: #{dinov2_feature_extractor.14} parent=0 // loop_pre_header
    _
  $region3: #{dinov2_feature_extractor.14} parent=0 // loop_header
    %s9 = sphi 0, %s13
    %p10 = scmp.ge.s32.totalorder %s9, 6
    %s16 = sphi 0, %s28
    %s17 = sphi 0, %s24
    %s18 = sphi 0, %s16
    %s19 = sphi 0, %s17
    %s20 = sphi 0, %s18
    %s21 = sphi 0, %s19
    %s33 = sphi 0, %s35
    %s36 = sphi 0, %s33
    %s37 = sphi 0, %s36
    %s53 = sphi 0, %s37
    %s59 = sphi 0, %s61
    %s62 = sphi 0, %s59
    %s63 = sphi 0, %s62
    %s79 = sphi 0, %s63
    %s85 = sphi 0, %s87
    %s88 = sphi 0, %s85
    %s89 = sphi 0, %s88
    %s105 = sphi 0, %s89
    %s113 = sphi 0, %s115
    %s116 = sphi 0, %s113
    %s117 = sphi 0, %s116
    %s133 = sphi 0, %s117
  $region4: #{dinov2_feature_extractor.14} parent=0 // loop_header_branch
    %12 = sbr.rel (%p10) target = $region8
  $region5: #{dinov2_feature_extractor.14} parent=0 // loop_body
    %s14 = ssub.s32 %s9, 1
    %s15 = ssub.s32 %s9, 2
    %s22 = sadd.s32 1, %s17
    %p23 = scmp.ge.s32.totalorder %s22, 1
    %s24 = scalar_select %p23, 0, %s22
    %s25 = sadd.s32 1, %s16
    %s26 = scalar_select %p23, %s25, %s16
    %p27 = scmp.ge.s32.totalorder %s26, 4
    %s28 = scalar_select %p27, 0, %s26
    %s29 = ssub.s32 %s16, %s28
    %s30 = ssub.s32 %s17, %s24
    %s31 = sor.u32 %s29, %s30
    %p32 = scmp.eq.s32.totalorder %s31, 0
    %s34 = sadd.s32 %s33, 1
    %s35 = scalar_select %p32, %s33, %s34
    %p38 = pneg %p32
    %p39 = scmp.eq.s32.totalorder %s9, 3
    %p40 = por %p38, %p39
    %p41 = scmp.ne.s32.totalorder %s33, %s36
    %p42 = scmp.eq.s32.totalorder %s9, 0
    %p43 = por %p41, %p42
    %p44 = scmp.ne.s32.totalorder %s33, %s36
    %p45 = scmp.eq.s32.totalorder %s14, 3
    %p46 = por %p44, %p45
    %p47 = scmp.ne.s32.totalorder %s36, %s37
    %p48 = scmp.eq.s32.totalorder %s14, 0
    %p49 = por %p47, %p48
    %p50 = scmp.ne.s32.totalorder %s36, %s37
    %p51 = scmp.eq.s32.totalorder %s15, 3
    %p52 = por %p50, %p51
    %p54 = scmp.ne.s32.totalorder %s37, %s53
    %p55 = scmp.eq.s32.totalorder %s15, 0
    %p56 = por %p54, %p55
    %s57 = ssub.s32 %s16, %s28
    %p58 = scmp.eq.s32.totalorder %s57, 0
    %s60 = sadd.s32 %s59, 1
    %s61 = scalar_select %p58, %s59, %s60
    %p64 = pneg %p58
    %p65 = scmp.eq.s32.totalorder %s9, 3
    %p66 = por %p64, %p65
    %p67 = scmp.ne.s32.totalorder %s59, %s62
    %p68 = scmp.eq.s32.totalorder %s9, 0
    %p69 = por %p67, %p68
    %p70 = scmp.ne.s32.totalorder %s59, %s62
    %p71 = scmp.eq.s32.totalorder %s14, 3
    %p72 = por %p70, %p71
    %p73 = scmp.ne.s32.totalorder %s62, %s63
    %p74 = scmp.eq.s32.totalorder %s14, 0
    %p75 = por %p73, %p74
    %p76 = scmp.ne.s32.totalorder %s62, %s63
    %p77 = scmp.eq.s32.totalorder %s15, 3
    %p78 = por %p76, %p77
    %p80 = scmp.ne.s32.totalorder %s63, %s79
    %p81 = scmp.eq.s32.totalorder %s15, 0
    %p82 = por %p80, %p81
    %s83 = ssub.s32 %s16, %s28
    %p84 = scmp.eq.s32.totalorder %s83, 0
    %s86 = sadd.s32 %s85, 1
    %s87 = scalar_select %p84, %s85, %s86
    %p90 = pneg %p84
    %p91 = scmp.eq.s32.totalorder %s9, 3
    %p92 = por %p90, %p91
    %p93 = scmp.ne.s32.totalorder %s85, %s88
    %p94 = scmp.eq.s32.totalorder %s9, 0
    %p95 = por %p93, %p94
    %p96 = scmp.ne.s32.totalorder %s85, %s88
    %p97 = scmp.eq.s32.totalorder %s14, 3
    %p98 = por %p96, %p97
    %p99 = scmp.ne.s32.totalorder %s88, %s89
    %p100 = scmp.eq.s32.totalorder %s14, 0
    %p101 = por %p99, %p100
    %p102 = scmp.ne.s32.totalorder %s88, %s89
    %p103 = scmp.eq.s32.totalorder %s15, 3
    %p104 = por %p102, %p103
    %p106 = scmp.ne.s32.totalorder %s89, %s105
    %p107 = scmp.eq.s32.totalorder %s15, 0
    %p108 = por %p106, %p107
    %s109 = ssub.s32 %s16, %s28
    %s110 = ssub.s32 %s17, %s24
    %s111 = sor.u32 %s109, %s110
    %p112 = scmp.eq.s32.totalorder %s111, 0
    %s114 = sadd.s32 %s113, 1
    %s115 = scalar_select %p112, %s113, %s114
    %p118 = pneg %p112
    %p119 = scmp.eq.s32.totalorder %s9, 3
    %p120 = por %p118, %p119
    %p121 = scmp.ne.s32.totalorder %s113, %s116
    %p122 = scmp.eq.s32.totalorder %s9, 0
    %p123 = por %p121, %p122
    %p124 = scmp.ne.s32.totalorder %s113, %s116
    %p125 = scmp.eq.s32.totalorder %s14, 3
    %p126 = por %p124, %p125
    %p127 = scmp.ne.s32.totalorder %s116, %s117
    %p128 = scmp.eq.s32.totalorder %s14, 0
    %p129 = por %p127, %p128
    %p130 = scmp.ne.s32.totalorder %s116, %s117
    %p131 = scmp.eq.s32.totalorder %s15, 3
    %p132 = por %p130, %p131
    %p134 = scmp.ne.s32.totalorder %s117, %s133
    %p135 = scmp.eq.s32.totalorder %s15, 0
    %p136 = por %p134, %p135
    %p137 = scmp.le.s32.totalorder 1, %s9
    %p138 = scmp.lt.s32.totalorder %s9, 5
    %p139 = pnand %p137, %p138
    %p140 = pneg %p139
    // Predicated region
    $region9: #{dinov2_feature_extractor.14} parent=5 // pred_check
      _
    $region10: #{dinov2_feature_extractor.14} parent=5 // pred_check_branch
      %142 = sbr.rel (%p139) target = $region12
    $region11: #{dinov2_feature_extractor.14} parent=5 // pred_region
      %s143 = ssub.s32 %s9, 1
    $region12: #{dinov2_feature_extractor.14} parent=5 // pred_fallthru
      _
    %p144 = scmp.lt.s32.totalorder %s9, 4
    // Predicated region
    $region13: #{dinov2_feature_extractor.14} parent=5 // pred_check
      %p145 = pneg %p144
    $region14: #{dinov2_feature_extractor.14} parent=5 // pred_check_branch
      %147 = sbr.rel (%p145) target = $region16
    $region15: #{dinov2_feature_extractor.14} parent=5 // pred_region
      // Predicated region
      $region17: #{dinov2_feature_extractor.14} parent=15 // pred_check
        %p148 = pneg %p43
      $region18: #{dinov2_feature_extractor.14} parent=15 // pred_check_branch
        %150 = sbr.rel (%p148) target = $region20
      $region19: #{dinov2_feature_extractor.14} parent=15 // pred_region
        %p151 = scmp.lt.s32.totalorder %s16, 3
        %s152 = scalar_select %p151, %s16, 3
        %p153 = scmp.lt.s32.totalorder %s17, 0
        %s154 = scalar_select %p153, %s17, 0
        %s155 = sadd.s32 %s154, %s152
        %s156 = smul.addr %s155, 4
        %s157 = scalar_lea.vmem %s0, %s156
      $region20: #{dinov2_feature_extractor.14} parent=15 // pred_fallthru
        _
      // Predicated region
      $region21: #{dinov2_feature_extractor.14} parent=15 // pred_check
        %p158 = pneg %p69
      $region22: #{dinov2_feature_extractor.14} parent=15 // pred_check_branch
        %160 = sbr.rel (%p158) target = $region24
      $region23: #{dinov2_feature_extractor.14} parent=15 // pred_region
        %p161 = scmp.lt.s32.totalorder %s16, 3
        %s162 = scalar_select %p161, %s16, 3
        %s163 = smul.addr %s162, 4
        %s164 = scalar_lea.vmem %s1, %s163
      $region24: #{dinov2_feature_extractor.14} parent=15 // pred_fallthru
        _
      // Predicated region
      $region25: #{dinov2_feature_extractor.14} parent=15 // pred_check
        %p165 = pneg %p95
      $region26: #{dinov2_feature_extractor.14} parent=15 // pred_check_branch
        %167 = sbr.rel (%p165) target = $region28
      $region27: #{dinov2_feature_extractor.14} parent=15 // pred_region
        %p168 = scmp.lt.s32.totalorder %s16, 3
        %s169 = scalar_select %p168, %s16, 3
        %s170 = smul.addr %s169, 4
        %s171 = scalar_lea.vmem %s2, %s170
      $region28: #{dinov2_feature_extractor.14} parent=15 // pred_fallthru
        _
    $region16: #{dinov2_feature_extractor.14} parent=5 // pred_fallthru
      _
    %p172 = scmp.le.s32.totalorder 1, %s9
    %p173 = scmp.lt.s32.totalorder %s9, 5
    %p174 = pnand %p172, %p173
    %p175 = pneg %p174
    // Predicated region
    $region29: #{dinov2_feature_extractor.14} parent=5 // pred_check
      _
    $region30: #{dinov2_feature_extractor.14} parent=5 // pred_check_branch
      %177 = sbr.rel (%p174) target = $region32
    $region31: #{dinov2_feature_extractor.14} parent=5 // pred_region
      %s178 = ssub.s32 %s9, 1
      %p179 = scmp.lt.s32.totalorder %s18, 3
      %s180 = scalar_select %p179, %s18, 3
      %p181 = scmp.lt.s32.totalorder %s19, 0
      %s182 = scalar_select %p181, %s19, 0
      %s183 = sadd.s32 %s182, %s180
      %s184 = smul.addr %s183, 4
      %s185 = scalar_lea.vmem %s0, %s184
      %p186 = pneg %p49
      %p187 = pneg %p46
      %p188 = scmp.lt.s32.totalorder %s18, 3
      %s189 = scalar_select %p188, %s18, 3
      %s190 = smul.addr %s189, 4
      %s191 = scalar_lea.vmem %s1, %s190
      %p192 = pneg %p75
      %p193 = pneg %p72
      %p194 = scmp.lt.s32.totalorder %s18, 3
      %s195 = scalar_select %p194, %s18, 3
      %s196 = smul.addr %s195, 4
      %s197 = scalar_lea.vmem %s2, %s196
      %p198 = pneg %p101
      %p199 = pneg %p98
      %p200 = pneg %p129
      %p201 = pneg %p126
      %p202 = scmp.lt.s32.totalorder %s18, 3
      %s203 = scalar_select %p202, %s18, 3
      %p204 = scmp.lt.s32.totalorder %s19, 0
      %s205 = scalar_select %p204, %s19, 0
      %s206 = sadd.s32 %s205, %s203
      %s207 = smul.addr %s206, 4
      %s208 = scalar_lea.vmem %s3, %s207
      %p209 = scmp.lt.s32.totalorder %s18, 3
      %s210 = scalar_select %p209, %s18, 3
      %p211 = scmp.lt.s32.totalorder %s19, 0
      %s212 = scalar_select %p211, %s19, 0
      %s213 = sadd.s32 %s212, %s210
      %s214 = smul.addr %s213, 4
      %s215 = scalar_lea.vmem %s0, %s214
      %p216 = scmp.lt.s32.totalorder %s18, 3
      %s217 = scalar_select %p216, %s18, 3
      %s218 = smul.addr %s217, 4
      %s219 = scalar_lea.vmem %s1, %s218
      %p220 = scmp.lt.s32.totalorder %s18, 3
      %s221 = scalar_select %p220, %s18, 3
      %s222 = smul.addr %s221, 4
      %s223 = scalar_lea.vmem %s2, %s222
      %p224 = scmp.lt.s32.totalorder %s18, 3
      %s225 = scalar_select %p224, %s18, 3
      %p226 = scmp.lt.s32.totalorder %s19, 0
      %s227 = scalar_select %p226, %s19, 0
      %s228 = sadd.s32 %s227, %s225
      %s229 = smul.addr %s228, 4
      %s230 = scalar_lea.vmem %s3, %s229
      %v232 = vld [vmem:[%s215] sm:$0xf]
      %v233 = vunpack.c.l.bf16 %v232
      %v234 = vmul.f32 %v233, 0.25
      %v235 = vpack.c.bf16 %v234, %v234
      %v236 = vld [vmem:[%s219] sm:$0x7]
      %v237 = vld [vmem:[%s223] sm:$0x7]
      %vm238 = vcmask 130048
      %v240 = vsel %vm238, %v235, 0
      %v243 = vsel %vm238, %v236, 0
      %245 = vmatprep.subr.bf16.mxu0 0
      %246 = vmatpush1.bf16.xpose.msra.mxu0 %v243
      %247 = vmatprep.subr.bf16.mxu0 0
      %248 = vmatpush1.bf16.xpose.msra.mxu0 0
      %249 = vmatprep.subr.bf16.mxu0 0
      %250 = vmatpush1.bf16.xpose.msra.mxu0 0
      %251 = vmatprep.subr.bf16.mxu0 0
      %252 = vmatpush1.bf16.xpose.msra.mxu0 0
      %253 = vmatprep.subr.bf16.mxu0 0
      %254 = vmatpush1.bf16.xpose.msra.mxu0 0
      %255 = vmatprep.subr.bf16.mxu0 0
      %256 = vmatpush1.bf16.xpose.msra.mxu0 0
      %257 = vmatprep.subr.bf16.mxu0 0
      %258 = vmatpush1.bf16.xpose.msra.mxu0 0
      %259 = vmatprep.subr.bf16.mxu0 0
      %260 = vmatpush1.bf16.xpose.msra.mxu0 0
      %261 = vmatprep.subr.bf16.mxu0 0
      %262 = vmatpush1.bf16.xpose.msra.mxu0 0
      %263 = vmatprep.subr.bf16.mxu0 0
      %264 = vmatpush1.bf16.xpose.msra.mxu0 0
      %265 = vmatprep.subr.bf16.mxu0 0
      %266 = vmatpush1.bf16.xpose.msra.mxu0 0
      %267 = vmatprep.subr.bf16.mxu0 0
      %268 = vmatpush1.bf16.xpose.msra.mxu0 0
      %269 = vmatprep.subr.bf16.mxu0 0
      %270 = vmatpush1.bf16.xpose.msra.mxu0 0
      %271 = vmatprep.subr.bf16.mxu0 0
      %272 = vmatpush1.bf16.xpose.msra.mxu0 0
      %273 = vmatprep.subr.bf16.mxu0 0
      %274 = vmatpush1.bf16.xpose.msra.mxu0 0
      %275 = vmatprep.subr.bf16.mxu0 0
      %276 = vmatpush1.bf16.xpose.msra.mxu0 0
      %277 = vmatprep.mubr.bf16.mxu0 0
      %278 = vmatmul.mubr.bf16.gmra.mrb[0].mxu0 %v240
      %v279 = vpop.f32.mrb[0].mxu0
      %v280 = vadd.f32 0.0, %v279
      %v281 = vpop.f32.mrb[0].mxu0
      %v282 = vpop.f32.mrb[0].mxu0
      %v283 = vpop.f32.mrb[0].mxu0
      %284 = vdwg.mxu0
      %vm285 = vcmask 39936
      %v286 = vsel %vm285, %v280, -inf
      %287 = vmax.xlane.f32.xlu0 %v286
      %v288 = vpop.xlane.xlu0 %287
      %v289 = vsub.f32 %v280, %v288
      %v290 = vmul.f32 %v289, 1.442695
      %v291 = vpow.pop %v290
      %v292 = vsel %vm285, %v291, 0.0
      %293 = vadd.xlane.f32.xlu0 %v292
      %v294 = vpop.xlane.xlu0 %293
      %v295 = vpack.c.bf16 %v291, %v291
      %v297 = vsel %vm285, %v295, 0
      %vm299 = vcmask 1041408
      %vm300 = vcmask 1042432
      %v301 = vsel %vm299, 4294967295, 65535
      %v302 = vsel %vm300, %v301, 0
      %v304 = vand.u32 %v237, %v302
      %306 = vmatprep.subr.bf16.mxu0 0
      %307 = vmatpush1.bf16.msra.mxu0 %v304
      %308 = vmatprep.subr.bf16.mxu0 0
      %309 = vmatpush1.bf16.msra.mxu0 0
      %310 = vmatprep.subr.bf16.mxu0 0
      %311 = vmatpush1.bf16.msra.mxu0 0
      %312 = vmatprep.subr.bf16.mxu0 0
      %313 = vmatpush1.bf16.msra.mxu0 0
      %314 = vmatprep.subr.bf16.mxu0 0
      %315 = vmatpush1.bf16.msra.mxu0 0
      %316 = vmatprep.subr.bf16.mxu0 0
      %317 = vmatpush1.bf16.msra.mxu0 0
      %318 = vmatprep.subr.bf16.mxu0 0
      %319 = vmatpush1.bf16.msra.mxu0 0
      %320 = vmatprep.subr.bf16.mxu0 0
      %321 = vmatpush1.bf16.msra.mxu0 0
      %322 = vmatprep.subr.bf16.mxu0 0
      %323 = vmatpush1.bf16.msra.mxu0 0
      %324 = vmatprep.subr.bf16.mxu0 0
      %325 = vmatpush1.bf16.msra.mxu0 0
      %326 = vmatprep.subr.bf16.mxu0 0
      %327 = vmatpush1.bf16.msra.mxu0 0
      %328 = vmatprep.subr.bf16.mxu0 0
      %329 = vmatpush1.bf16.msra.mxu0 0
      %330 = vmatprep.subr.bf16.mxu0 0
      %331 = vmatpush1.bf16.msra.mxu0 0
      %332 = vmatprep.subr.bf16.mxu0 0
      %333 = vmatpush1.bf16.msra.mxu0 0
      %334 = vmatprep.subr.bf16.mxu0 0
      %335 = vmatpush1.bf16.msra.mxu0 0
      %336 = vmatprep.subr.bf16.mxu0 0
      %337 = vmatpush1.bf16.msra.mxu0 0
      %338 = vmatprep.mubr.bf16.mxu0 0
      %339 = vmatmul.mubr.bf16.gmra.mrb[0].mxu0 %v297
      %v340 = vpop.f32.mrb[0].mxu0
      %v341 = vadd.f32 0.0, %v340
      %v342 = vpop.f32.mrb[0].mxu0
      %v343 = vpop.f32.mrb[0].mxu0
      %v344 = vpop.f32.mrb[0].mxu0
      %345 = vdwg.mxu0
      %v346 = vrcp.pop %v294
      %v347 = vmul.f32 %v341, %v346
      %v348 = vpack.c.bf16 %v347, %v347
      %vm349 = vcmask 125952
      %350 = vst.msk [vmem:[%s230] sm:$0xf] %vm349, %v348
      %p351 = scmp.lt.s32.totalorder %s18, 3
      %s352 = scalar_select %p351, %s18, 3
      %p353 = scmp.lt.s32.totalorder %s19, 0
      %s354 = scalar_select %p353, %s19, 0
      %s355 = sadd.s32 %s354, %s352
      %s356 = smul.addr %s355, 4
      %s357 = scalar_lea.vmem %s3, %s356
      // Predicated region
      $region33: #{dinov2_feature_extractor.14} parent=31 // pred_check
        %p358 = pneg %p126
      $region34: #{dinov2_feature_extractor.14} parent=31 // pred_check_branch
        %360 = sbr.rel (%p358) target = $region36
      $region35: #{dinov2_feature_extractor.14} parent=31 // pred_region
        _
      $region36: #{dinov2_feature_extractor.14} parent=31 // pred_fallthru
        _
    $region32: #{dinov2_feature_extractor.14} parent=5 // pred_fallthru
      _
    %p361 = scmp.le.s32.totalorder 2, %s9
    // Predicated region
    $region37: #{dinov2_feature_extractor.14} parent=5 // pred_check
      %p362 = pneg %p361
    $region38: #{dinov2_feature_extractor.14} parent=5 // pred_check_branch
      %364 = sbr.rel (%p362) target = $region40
    $region39: #{dinov2_feature_extractor.14} parent=5 // pred_region
      %s365 = ssub.s32 %s9, 2
      // Predicated region
      $region41: #{dinov2_feature_extractor.14} parent=39 // pred_check
        %p366 = pneg %p132
      $region42: #{dinov2_feature_extractor.14} parent=39 // pred_check_branch
        %368 = sbr.rel (%p366) target = $region44
      $region43: #{dinov2_feature_extractor.14} parent=39 // pred_region
        %p369 = scmp.lt.s32.totalorder %s20, 3
        %s370 = scalar_select %p369, %s20, 3
        %p371 = scmp.lt.s32.totalorder %s21, 0
        %s372 = scalar_select %p371, %s21, 0
        %s373 = sadd.s32 %s372, %s370
        %s374 = smul.addr %s373, 4
        %s375 = scalar_lea.vmem %s3, %s374
      $region44: #{dinov2_feature_extractor.14} parent=39 // pred_fallthru
        _
    $region40: #{dinov2_feature_extractor.14} parent=5 // pred_fallthru
      _
  $region6: #{dinov2_feature_extractor.14} parent=0 // loop_footer
    %s13 = sadd.s32 1, %s9
  $region7: #{dinov2_feature_extractor.14} parent=0 // loop_footer_branch
    %8 = sbr.rel target = $region3
  $region8: #{dinov2_feature_extractor.14} parent=0 // loop_exit
    _

// kernel: dinov2_feature_extractor.13
$region0: #{dinov2_feature_extractor.13}
  #allocation0 [shape = 'u32[]', space=smem, size = 0x4, offset = 0x4, fixed_abs, tag = 'smem constant byte address 0x4 - core index']
  #allocation1 [shape = 'u32[144,128]{1,0:T(1,128)}', space=vmem, size = 0x12000, scoped, tag = 'internal scratch']
  #allocation2 [shape = 'bf16[16,32]{1,0:T(16,128)(2,1)}', space=vmem, size = 0x1000, scoped, tag = 'scratch operand']
  %s0 = inlined_call_operand.vmem [shape: f32[16,32], index: 0, kind: input, shape index: {}]
  %s1 = inlined_call_operand.vmem [shape: f32[1,32], index: 1, kind: input, shape index: {}]
  %s2 = inlined_call_operand.vmem [shape: f32[1,32], index: 2, kind: input, shape index: {}]
  %s3 = inlined_call_operand.vmem [shape: bf16[32,96], index: 3, kind: input, shape index: {}]
  %s4 = inlined_call_operand.vmem [shape: f32[1,96], index: 4, kind: input, shape index: {}]
  %s5 = inlined_call_operand.vmem [shape: bf16[16,96], index: 5, kind: output, shape index: {}]
  %s6 = sld [smem:[#allocation0]]
  $region34: #{dinov2_feature_extractor.13} parent=0
    _
  %s8 = ssub.s32 1, %s6
  %s9 = scalar_select 0, %s8, %s6
  // Predicated region
  $region2: #{dinov2_feature_extractor.13} parent=0 // pred_check
    _
  $region3: #{dinov2_feature_extractor.13} parent=0 // pred_check_branch
    %11 = sbr.rel (0) target = $region5
  $region4: #{dinov2_feature_extractor.13} parent=0 // pred_region
    _
  $region5: #{dinov2_feature_extractor.13} parent=0 // pred_fallthru
    _
  // Predicated region
  $region6: #{dinov2_feature_extractor.13} parent=0 // pred_check
    _
  $region7: #{dinov2_feature_extractor.13} parent=0 // pred_check_branch
    %13 = sbr.rel (0) target = $region9
  $region8: #{dinov2_feature_extractor.13} parent=0 // pred_region
    _
  $region9: #{dinov2_feature_extractor.13} parent=0 // pred_fallthru
    _
  // Predicated region
  $region10: #{dinov2_feature_extractor.13} parent=0 // pred_check
    _
  $region11: #{dinov2_feature_extractor.13} parent=0 // pred_check_branch
    %15 = sbr.rel (0) target = $region13
  $region12: #{dinov2_feature_extractor.13} parent=0 // pred_region
    _
  $region13: #{dinov2_feature_extractor.13} parent=0 // pred_fallthru
    _
  // Predicated region
  $region14: #{dinov2_feature_extractor.13} parent=0 // pred_check
    _
  $region15: #{dinov2_feature_extractor.13} parent=0 // pred_check_branch
    %17 = sbr.rel (0) target = $region17
  $region16: #{dinov2_feature_extractor.13} parent=0 // pred_region
    _
  $region17: #{dinov2_feature_extractor.13} parent=0 // pred_fallthru
    _
  // Predicated region
  $region18: #{dinov2_feature_extractor.13} parent=0 // pred_check
    _
  $region19: #{dinov2_feature_extractor.13} parent=0 // pred_check_branch
    %19 = sbr.rel (0) target = $region21
  $region20: #{dinov2_feature_extractor.13} parent=0 // pred_region
    _
  $region21: #{dinov2_feature_extractor.13} parent=0 // pred_fallthru
    _
  %p21 = scmp.eq.s32.totalorder 0, 0
  // Predicated region
  $region22: #{dinov2_feature_extractor.13} parent=0 // pred_check
    %p22 = pneg %p21
  $region23: #{dinov2_feature_extractor.13} parent=0 // pred_check_branch
    %24 = sbr.rel (%p22) target = $region25
  $region24: #{dinov2_feature_extractor.13} parent=0 // pred_region
    %v25 = vld [vmem:[%s0] sm:$0xff]
    %v26 = vld [vmem:[%s0 + $0x8] sm:$0xff]
    %vm27 = vcmask 261120
    %v28 = vsel %vm27, %v25, 0.0
    %29 = vadd.xlane.f32.xlu0 %v28
    %v30 = vpop.xlane.xlu0 %29
    %v31 = vsel %vm27, %v26, 0.0
    %32 = vadd.xlane.f32.xlu0 %v31
    %v33 = vpop.xlane.xlu0 %32
    %v34 = vrcp.pop 32.0
    %v35 = vmul.f32 %v30, %v34
    %v36 = vmul.f32 %v33, %v34
    %v37 = vsub.f32 %v25, %v35
    %v38 = vsub.f32 %v26, %v36
    %v39 = vmul.f32 %v37, %v37
    %v40 = vmul.f32 %v38, %v38
    %v41 = vsel %vm27, %v39, 0.0
    %42 = vadd.xlane.f32.xlu0 %v41
    %v43 = vpop.xlane.xlu0 %42
    %v44 = vsel %vm27, %v40, 0.0
    %45 = vadd.xlane.f32.xlu0 %v44
    %v46 = vpop.xlane.xlu0 %45
    %v47 = vmul.f32 %v43, %v34
    %v48 = vmul.f32 %v46, %v34
    %v49 = vadd.f32 %v47, 1e-06
    %v50 = vadd.f32 %v48, 1e-06
    %v51 = vrsqrt.pop %v49
    %v52 = vrsqrt.pop %v50
    %v53 = vmul.f32 %v37, %v51
    %v54 = vmul.f32 %v38, %v52
    %v55 = vld [vmem:[%s1] sm:$0x1]
    %v57 = vlaneseq
    %v58 = vshrl.u32 %v57, 7
    %v59 = vsub.s32 0, %v58
    %v60 = vrot.slane %v55, %v59
    %v62 = vmul.f32 %v53, %v60
    %v63 = vmul.f32 %v54, %v60
    %v64 = vld [vmem:[%s2] sm:$0x1]
    %v66 = vlaneseq
    %v67 = vshrl.u32 %v66, 7
    %v68 = vsub.s32 0, %v67
    %v69 = vrot.slane %v64, %v68
    %v71 = vadd.f32 %v62, %v69
    %v72 = vadd.f32 %v63, %v69
    %v73 = vpack.c.bf16 %v72, %v71
    %74 = vst.msk [vmem:[#allocation2] sm:$0xff] %vm27, %v73
  $region25: #{dinov2_feature_extractor.13} parent=0 // pred_fallthru
    _
  %v75 = vld [vmem:[#allocation2] sm:$0xff]
  %v76 = vld [vmem:[%s3] sm:$0xf]
  %v77 = vld [vmem:[%s3 + $0x4] sm:$0xf]
  %v78 = vld [vmem:[%s3 + $0x8] sm:$0xf]
  %v79 = vld [vmem:[%s3 + $0xc] sm:$0xf]
  %v80 = vld [vmem:[%s4] sm:$0x1]
  %v82 = vlaneseq
  %v83 = vshrl.u32 %v82, 7
  %v84 = vsub.s32 0, %v83
  %v85 = vrot.slane %v80, %v84
  %v91 = vunpack.c.l.b16 %v76
  %v92 = vunpack.c.l.b16 %v77
  %v93 = vunpack.c.l.b16 %v78
  %v94 = vunpack.c.l.b16 %v79
  %v95 = vpack.c.b16 %v92, %v91
  %v96 = vpack.c.b16 %v94, %v93
  %vm99 = vcmask 261120
  %v101 = vsel %vm99, %v75, 0
  %103 = vmatprep.subr.bf16.mxu0 0
  %104 = vmatpush1.bf16.msra.mxu0 %v95
  %105 = vmatprep.subr.bf16.mxu0 0
  %106 = vmatpush1.bf16.msra.mxu0 %v96
  %107 = vmatprep.subr.bf16.mxu0 0
  %108 = vmatpush1.bf16.msra.mxu0 0
  %109 = vmatprep.subr.bf16.mxu0 0
  %110 = vmatpush1.bf16.msra.mxu0 0
  %111 = vmatprep.subr.bf16.mxu0 0
  %112 = vmatpush1.bf16.msra.mxu0 0
  %113 = vmatprep.subr.bf16.mxu0 0
  %114 = vmatpush1.bf16.msra.mxu0 0
  %115 = vmatprep.subr.bf16.mxu0 0
  %116 = vmatpush1.bf16.msra.mxu0 0
  %117 = vmatprep.subr.bf16.mxu0 0
  %118 = vmatpush1.bf16.msra.mxu0 0
  %119 = vmatprep.subr.bf16.mxu0 0
  %120 = vmatpush1.bf16.msra.mxu0 0
  %121 = vmatprep.subr.bf16.mxu0 0
  %122 = vmatpush1.bf16.msra.mxu0 0
  %123 = vmatprep.subr.bf16.mxu0 0
  %124 = vmatpush1.bf16.msra.mxu0 0
  %125 = vmatprep.subr.bf16.mxu0 0
  %126 = vmatpush1.bf16.msra.mxu0 0
  %127 = vmatprep.subr.bf16.mxu0 0
  %128 = vmatpush1.bf16.msra.mxu0 0
  %129 = vmatprep.subr.bf16.mxu0 0
  %130 = vmatpush1.bf16.msra.mxu0 0
  %131 = vmatprep.subr.bf16.mxu0 0
  %132 = vmatpush1.bf16.msra.mxu0 0
  %133 = vmatprep.subr.bf16.mxu0 0
  %134 = vmatpush1.bf16.msra.mxu0 0
  %135 = vmatprep.mubr.bf16.mxu0 0
  %136 = vmatmul.mubr.bf16.gmra.mrb[0].mxu0 %v101
  %v137 = vpop.f32.mrb[0].mxu0
  %v138 = vadd.f32 %v85, %v137
  %v139 = vpop.f32.mrb[0].mxu0
  %v140 = vpop.f32.mrb[0].mxu0
  %v141 = vadd.f32 %v85, %v140
  %v142 = vpop.f32.mrb[0].mxu0
  %143 = vdwg.mxu0
  %v144 = vpack.c.bf16 %v141, %v138
  %v146 = vunpack.c.l.b16 %v144
  %v147 = vunpack.c.h.b16 %v144
  %v148 = vpack.c.b16 %v146, %v146
  %v149 = vpack.c.b16 %v147, %v147
  %vm152 = vcmask 781312
  %153 = vst.msk [vmem:[%s5] sm:$0xf] %vm152, %v148
  %154 = vst.msk [vmem:[%s5 + $0x4] sm:$0xf] %vm152, %v149
  // Predicated region
  $region26: #{dinov2_feature_extractor.13} parent=0 // pred_check
    _
  $region27: #{dinov2_feature_extractor.13} parent=0 // pred_check_branch
    %156 = sbr.rel (0) target = $region29
  $region28: #{dinov2_feature_extractor.13} parent=0 // pred_region
    _
  $region29: #{dinov2_feature_extractor.13} parent=0 // pred_fallthru
    _
  // Predicated region
  $region30: #{dinov2_feature_extractor.13} parent=0 // pred_check
    _
  $region31: #{dinov2_feature_extractor.13} parent=0 // pred_check_branch
    %158 = sbr.rel (0) target = $region33
  $region32: #{dinov2_feature_extractor.13} parent=0 // pred_region
    _
  $region33: #{dinov2_feature_extractor.13} parent=0 // pred_fallthru
    _

// kernel: dinov2_feature_extractor.12
$region0: #{dinov2_feature_extractor.12}
  #allocation0 [shape = 'u32[]', space=smem, size = 0x4, offset = 0x4, fixed_abs, tag = 'smem constant byte address 0x4 - core index']
  #allocation1 [shape = 'u32[144,128]{1,0:T(1,128)}', space=vmem, size = 0x12000, scoped, tag = 'internal scratch']
  #allocation2 [shape = 'f32[8,32]{1,0:T(8,128)}', space=vmem, size = 0x1000, scoped, tag = 'scratch operand']
  %s0 = inlined_call_operand.vmem [shape: f32[8,588], index: 0, kind: input, shape index: {}]
  %s1 = inlined_call_operand.vmem [shape: bf16[588,32], index: 1, kind: input, shape index: {}]
  %s2 = inlined_call_operand.vmem [shape: f32[1,32], index: 2, kind: input, shape index: {}]
  %s3 = inlined_call_operand.vmem [shape: f32[8,32], index: 3, kind: output, shape index: {}]
  %s4 = sld [smem:[#allocation0]]
  $region30: #{dinov2_feature_extractor.12} parent=0
    _
  %s6 = ssub.s32 1, %s4
  %s7 = scalar_select 0, %s6, %s4
  // Predicated region
  $region2: #{dinov2_feature_extractor.12} parent=0 // pred_check
    _
  $region3: #{dinov2_feature_extractor.12} parent=0 // pred_check_branch
    %9 = sbr.rel (0) target = $region5
  $region4: #{dinov2_feature_extractor.12} parent=0 // pred_region
    _
  $region5: #{dinov2_feature_extractor.12} parent=0 // pred_fallthru
    _
  // Predicated region
  $region6: #{dinov2_feature_extractor.12} parent=0 // pred_check
    _
  $region7: #{dinov2_feature_extractor.12} parent=0 // pred_check_branch
    %11 = sbr.rel (0) target = $region9
  $region8: #{dinov2_feature_extractor.12} parent=0 // pred_region
    _
  $region9: #{dinov2_feature_extractor.12} parent=0 // pred_fallthru
    _
  // Predicated region
  $region10: #{dinov2_feature_extractor.12} parent=0 // pred_check
    _
  $region11: #{dinov2_feature_extractor.12} parent=0 // pred_check_branch
    %13 = sbr.rel (0) target = $region13
  $region12: #{dinov2_feature_extractor.12} parent=0 // pred_region
    _
  $region13: #{dinov2_feature_extractor.12} parent=0 // pred_fallthru
    _
  %p15 = scmp.eq.s32.totalorder 0, 0
  // Predicated region
  $region14: #{dinov2_feature_extractor.12} parent=0 // pred_check
    %p16 = pneg %p15
  $region15: #{dinov2_feature_extractor.12} parent=0 // pred_check_branch
    %18 = sbr.rel (%p16) target = $region17
  $region16: #{dinov2_feature_extractor.12} parent=0 // pred_region
    %vm19 = vcmask 261120
    %20 = vst.msk [vmem:[#allocation2] sm:$0xff] %vm19, 0.0
  $region17: #{dinov2_feature_extractor.12} parent=0 // pred_fallthru
    _
  %v21 = vld [vmem:[#allocation2] sm:$0xff]
  %v22 = vld [vmem:[%s0] sm:$0xff]
  %v23 = vld [vmem:[%s0 + $0x8] sm:$0xff]
  %v24 = vld [vmem:[%s0 + $0x10] sm:$0xff]
  %v25 = vld [vmem:[%s0 + $0x18] sm:$0xff]
  %v26 = vld [vmem:[%s0 + $0x20] sm:$0xff]
  %v27 = vpack.c.bf16 %v22, %v22
  %v28 = vpack.c.bf16 %v23, %v23
  %v29 = vpack.c.bf16 %v24, %v24
  %v30 = vpack.c.bf16 %v25, %v25
  %v31 = vpack.c.bf16 %v26, %v26
  %v32 = vld [vmem:[%s1] sm:$0xf]
  %v33 = vld [vmem:[%s1 + $0x4] sm:$0xf]
  %v34 = vld [vmem:[%s1 + $0x8] sm:$0xf]
  %v35 = vld [vmem:[%s1 + $0xc] sm:$0xf]
  %v36 = vld [vmem:[%s1 + $0x10] sm:$0xf]
  %v37 = vld [vmem:[%s1 + $0x14] sm:$0xf]
  %v38 = vld [vmem:[%s1 + $0x18] sm:$0xf]
  %v39 = vld [vmem:[%s1 + $0x1c] sm:$0xf]
  %v40 = vld [vmem:[%s1 + $0x20] sm:$0xf]
  %v41 = vld [vmem:[%s1 + $0x24] sm:$0xf]
  %v42 = vld [vmem:[%s1 + $0x28] sm:$0xf]
  %v43 = vld [vmem:[%s1 + $0x2c] sm:$0xf]
  %v44 = vld [vmem:[%s1 + $0x30] sm:$0xf]
  %v45 = vld [vmem:[%s1 + $0x34] sm:$0xf]
  %v46 = vld [vmem:[%s1 + $0x38] sm:$0xf]
  %v47 = vld [vmem:[%s1 + $0x3c] sm:$0xf]
  %v48 = vld [vmem:[%s1 + $0x40] sm:$0xf]
  %v49 = vld [vmem:[%s1 + $0x44] sm:$0xf]
  %v50 = vld [vmem:[%s1 + $0x48] sm:$0xf]
  %v51 = vld [vmem:[%s1 + $0x4c] sm:$0xf]
  %v52 = vld [vmem:[%s1 + $0x50] sm:$0xf]
  %v53 = vld [vmem:[%s1 + $0x54] sm:$0xf]
  %v54 = vld [vmem:[%s1 + $0x58] sm:$0xf]
  %v55 = vld [vmem:[%s1 + $0x5c] sm:$0xf]
  %v56 = vld [vmem:[%s1 + $0x60] sm:$0xf]
  %v57 = vld [vmem:[%s1 + $0x64] sm:$0xf]
  %v58 = vld [vmem:[%s1 + $0x68] sm:$0xf]
  %v59 = vld [vmem:[%s1 + $0x6c] sm:$0xf]
  %v60 = vld [vmem:[%s1 + $0x70] sm:$0xf]
  %v61 = vld [vmem:[%s1 + $0x74] sm:$0xf]
  %v62 = vld [vmem:[%s1 + $0x78] sm:$0xf]
  %v63 = vld [vmem:[%s1 + $0x7c] sm:$0xf]
  %v64 = vld [vmem:[%s1 + $0x80] sm:$0xf]
  %v65 = vld [vmem:[%s1 + $0x84] sm:$0xf]
  %v66 = vld [vmem:[%s1 + $0x88] sm:$0xf]
  %v67 = vld [vmem:[%s1 + $0x8c] sm:$0xf]
  %v68 = vld [vmem:[%s1 + $0x90] sm:$0xf]
  %v69 = vld [vmem:[%s1 + $0x94] sm:$0xf]
  %v70 = vld [vmem:[%s1 + $0x98] sm:$0xf]
  %v71 = vld [vmem:[%s1 + $0x9c] sm:$0xf]
  %v72 = vld [vmem:[%s1 + $0xa0] sm:$0xf]
  %v73 = vld [vmem:[%s1 + $0xa4] sm:$0xf]
  %v74 = vld [vmem:[%s1 + $0xa8] sm:$0xf]
  %v75 = vld [vmem:[%s1 + $0xac] sm:$0xf]
  %v76 = vld [vmem:[%s1 + $0xb0] sm:$0xf]
  %v77 = vld [vmem:[%s1 + $0xb4] sm:$0xf]
  %v78 = vld [vmem:[%s1 + $0xb8] sm:$0xf]
  %v79 = vld [vmem:[%s1 + $0xbc] sm:$0xf]
  %v80 = vld [vmem:[%s1 + $0xc0] sm:$0xf]
  %v81 = vld [vmem:[%s1 + $0xc4] sm:$0xf]
  %v82 = vld [vmem:[%s1 + $0xc8] sm:$0xf]
  %v83 = vld [vmem:[%s1 + $0xcc] sm:$0xf]
  %v84 = vld [vmem:[%s1 + $0xd0] sm:$0xf]
  %v85 = vld [vmem:[%s1 + $0xd4] sm:$0xf]
  %v86 = vld [vmem:[%s1 + $0xd8] sm:$0xf]
  %v87 = vld [vmem:[%s1 + $0xdc] sm:$0xf]
  %v88 = vld [vmem:[%s1 + $0xe0] sm:$0xf]
  %v89 = vld [vmem:[%s1 + $0xe4] sm:$0xf]
  %v90 = vld [vmem:[%s1 + $0xe8] sm:$0xf]
  %v91 = vld [vmem:[%s1 + $0xec] sm:$0xf]
  %v92 = vld [vmem:[%s1 + $0xf0] sm:$0xf]
  %v93 = vld [vmem:[%s1 + $0xf4] sm:$0xf]
  %v94 = vld [vmem:[%s1 + $0xf8] sm:$0xf]
  %v95 = vld [vmem:[%s1 + $0xfc] sm:$0xf]
  %v96 = vld [vmem:[%s1 + $0x100] sm:$0xf]
  %v97 = vld [vmem:[%s1 + $0x104] sm:$0xf]
  %v98 = vld [vmem:[%s1 + $0x108] sm:$0xf]
  %v99 = vld [vmem:[%s1 + $0x10c] sm:$0xf]
  %v100 = vld [vmem:[%s1 + $0x110] sm:$0xf]
  %v101 = vld [vmem:[%s1 + $0x114] sm:$0xf]
  %v102 = vld [vmem:[%s1 + $0x118] sm:$0xf]
  %v103 = vld [vmem:[%s1 + $0x11c] sm:$0xf]
  %v104 = vld [vmem:[%s1 + $0x120] sm:$0xf]
  %v105 = vld [vmem:[%s1 + $0x124] sm:$0x3]
  %v180 = vunpack.c.l.b16 %v32
  %v181 = vunpack.c.l.b16 %v33
  %v182 = vunpack.c.l.b16 %v34
  %v183 = vunpack.c.l.b16 %v35
  %v184 = vunpack.c.l.b16 %v36
  %v185 = vunpack.c.l.b16 %v37
  %v186 = vunpack.c.l.b16 %v38
  %v187 = vunpack.c.l.b16 %v39
  %v188 = vunpack.c.l.b16 %v40
  %v189 = vunpack.c.l.b16 %v41
  %v190 = vunpack.c.l.b16 %v42
  %v191 = vunpack.c.l.b16 %v43
  %v192 = vunpack.c.l.b16 %v44
  %v193 = vunpack.c.l.b16 %v45
  %v194 = vunpack.c.l.b16 %v46
  %v195 = vunpack.c.l.b16 %v47
  %v196 = vunpack.c.l.b16 %v48
  %v197 = vunpack.c.l.b16 %v49
  %v198 = vunpack.c.l.b16 %v50
  %v199 = vunpack.c.l.b16 %v51
  %v200 = vunpack.c.l.b16 %v52
  %v201 = vunpack.c.l.b16 %v53
  %v202 = vunpack.c.l.b16 %v54
  %v203 = vunpack.c.l.b16 %v55
  %v204 = vunpack.c.l.b16 %v56
  %v205 = vunpack.c.l.b16 %v57
  %v206 = vunpack.c.l.b16 %v58
  %v207 = vunpack.c.l.b16 %v59
  %v208 = vunpack.c.l.b16 %v60
  %v209 = vunpack.c.l.b16 %v61
  %v210 = vunpack.c.l.b16 %v62
  %v211 = vunpack.c.l.b16 %v63
  %v212 = vunpack.c.l.b16 %v64
  %v213 = vunpack.c.l.b16 %v65
  %v214 = vunpack.c.l.b16 %v66
  %v215 = vunpack.c.l.b16 %v67
  %v216 = vunpack.c.l.b16 %v68
  %v217 = vunpack.c.l.b16 %v69
  %v218 = vunpack.c.l.b16 %v70
  %v219 = vunpack.c.l.b16 %v71
  %v220 = vunpack.c.l.b16 %v72
  %v221 = vunpack.c.l.b16 %v73
  %v222 = vunpack.c.l.b16 %v74
  %v223 = vunpack.c.l.b16 %v75
  %v224 = vunpack.c.l.b16 %v76
  %v225 = vunpack.c.l.b16 %v77
  %v226 = vunpack.c.l.b16 %v78
  %v227 = vunpack.c.l.b16 %v79
  %v228 = vunpack.c.l.b16 %v80
  %v229 = vunpack.c.l.b16 %v81
  %v230 = vunpack.c.l.b16 %v82
  %v231 = vunpack.c.l.b16 %v83
  %v232 = vunpack.c.l.b16 %v84
  %v233 = vunpack.c.l.b16 %v85
  %v234 = vunpack.c.l.b16 %v86
  %v235 = vunpack.c.l.b16 %v87
  %v236 = vunpack.c.l.b16 %v88
  %v237 = vunpack.c.l.b16 %v89
  %v238 = vunpack.c.l.b16 %v90
  %v239 = vunpack.c.l.b16 %v91
  %v240 = vunpack.c.l.b16 %v92
  %v241 = vunpack.c.l.b16 %v93
  %v242 = vunpack.c.l.b16 %v94
  %v243 = vunpack.c.l.b16 %v95
  %v244 = vunpack.c.l.b16 %v96
  %v245 = vunpack.c.l.b16 %v97
  %v246 = vunpack.c.l.b16 %v98
  %v247 = vunpack.c.l.b16 %v99
  %v248 = vunpack.c.l.b16 %v100
  %v249 = vunpack.c.l.b16 %v101
  %v250 = vunpack.c.l.b16 %v102
  %v251 = vunpack.c.l.b16 %v103
  %v252 = vunpack.c.l.b16 %v104
  %v253 = vunpack.c.l.b16 %v105
  %v254 = vpack.c.b16 %v181, %v180
  %v255 = vpack.c.b16 %v183, %v182
  %v256 = vpack.c.b16 %v185, %v184
  %v257 = vpack.c.b16 %v187, %v186
  %v258 = vpack.c.b16 %v189, %v188
  %v259 = vpack.c.b16 %v191, %v190
  %v260 = vpack.c.b16 %v193, %v192
  %v261 = vpack.c.b16 %v195, %v194
  %v262 = vpack.c.b16 %v197, %v196
  %v263 = vpack.c.b16 %v199, %v198
  %v264 = vpack.c.b16 %v201, %v200
  %v265 = vpack.c.b16 %v203, %v202
  %v266 = vpack.c.b16 %v205, %v204
  %v267 = vpack.c.b16 %v207, %v206
  %v268 = vpack.c.b16 %v209, %v208
  %v269 = vpack.c.b16 %v211, %v210
  %v270 = vpack.c.b16 %v213, %v212
  %v271 = vpack.c.b16 %v215, %v214
  %v272 = vpack.c.b16 %v217, %v216
  %v273 = vpack.c.b16 %v219, %v218
  %v274 = vpack.c.b16 %v221, %v220
  %v275 = vpack.c.b16 %v223, %v222
  %v276 = vpack.c.b16 %v225, %v224
  %v277 = vpack.c.b16 %v227, %v226
  %v278 = vpack.c.b16 %v229, %v228
  %v279 = vpack.c.b16 %v231, %v230
  %v280 = vpack.c.b16 %v233, %v232
  %v281 = vpack.c.b16 %v235, %v234
  %v282 = vpack.c.b16 %v237, %v236
  %v283 = vpack.c.b16 %v239, %v238
  %v284 = vpack.c.b16 %v241, %v240
  %v285 = vpack.c.b16 %v243, %v242
  %v286 = vpack.c.b16 %v245, %v244
  %v287 = vpack.c.b16 %v247, %v246
  %v288 = vpack.c.b16 %v249, %v248
  %v289 = vpack.c.b16 %v251, %v250
  %v290 = vpack.c.b16 %v253, %v252
  %vm327 = vcmask 621568
  %v329 = vsel %vm327, %v31, 0
  %vm331 = vcmask 1045504
  %v333 = vsel %vm331, %v290, 0
  %335 = vmatprep.subr.bf16.mxu0 0
  %336 = vmatpush1.bf16.msra.mxu0 %v254
  %337 = vmatprep.subr.bf16.mxu0 0
  %338 = vmatpush1.bf16.msra.mxu0 %v255
  %339 = vmatprep.subr.bf16.mxu0 0
  %340 = vmatpush1.bf16.msra.mxu0 %v256
  %341 = vmatprep.subr.bf16.mxu0 0
  %342 = vmatpush1.bf16.msra.mxu0 %v257
  %343 = vmatprep.subr.bf16.mxu0 0
  %344 = vmatpush1.bf16.msra.mxu0 %v258
  %345 = vmatprep.subr.bf16.mxu0 0
  %346 = vmatpush1.bf16.msra.mxu0 %v259
  %347 = vmatprep.subr.bf16.mxu0 0
  %348 = vmatpush1.bf16.msra.mxu0 %v260
  %349 = vmatprep.subr.bf16.mxu0 0
  %350 = vmatpush1.bf16.msra.mxu0 %v261
  %351 = vmatprep.subr.bf16.mxu0 0
  %352 = vmatpush1.bf16.msra.mxu0 %v262
  %353 = vmatprep.subr.bf16.mxu0 0
  %354 = vmatpush1.bf16.msra.mxu0 %v263
  %355 = vmatprep.subr.bf16.mxu0 0
  %356 = vmatpush1.bf16.msra.mxu0 %v264
  %357 = vmatprep.subr.bf16.mxu0 0
  %358 = vmatpush1.bf16.msra.mxu0 %v265
  %359 = vmatprep.subr.bf16.mxu0 0
  %360 = vmatpush1.bf16.msra.mxu0 %v266
  %361 = vmatprep.subr.bf16.mxu0 0
  %362 = vmatpush1.bf16.msra.mxu0 %v267
  %363 = vmatprep.subr.bf16.mxu0 0
  %364 = vmatpush1.bf16.msra.mxu0 %v268
  %365 = vmatprep.subr.bf16.mxu0 0
  %366 = vmatpush1.bf16.msra.mxu0 %v269
  %367 = vmatprep.mubr.bf16.mxu0 %v28
  %368 = vmatmul.mubr.bf16.gmra.mrb[0].mxu0 %v27
  %v369 = vpop.f32.mrb[0].mxu0
  %v370 = vadd.f32 0.0, %v369
  %v371 = vpop.f32.mrb[0].mxu0
  %v372 = vpop.f32.mrb[0].mxu0
  %v373 = vpop.f32.mrb[0].mxu0
  %374 = vdwg.mxu0
  %375 = vmatprep.subr.bf16.mxu0 0
  %376 = vmatpush1.bf16.msra.mxu0 %v270
  %377 = vmatprep.subr.bf16.mxu0 0
  %378 = vmatpush1.bf16.msra.mxu0 %v271
  %379 = vmatprep.subr.bf16.mxu0 0
  %380 = vmatpush1.bf16.msra.mxu0 %v272
  %381 = vmatprep.subr.bf16.mxu0 0
  %382 = vmatpush1.bf16.msra.mxu0 %v273
  %383 = vmatprep.subr.bf16.mxu0 0
  %384 = vmatpush1.bf16.msra.mxu0 %v274
  %385 = vmatprep.subr.bf16.mxu0 0
  %386 = vmatpush1.bf16.msra.mxu0 %v275
  %387 = vmatprep.subr.bf16.mxu0 0
  %388 = vmatpush1.bf16.msra.mxu0 %v276
  %389 = vmatprep.subr.bf16.mxu0 0
  %390 = vmatpush1.bf16.msra.mxu0 %v277
  %391 = vmatprep.subr.bf16.mxu0 0
  %392 = vmatpush1.bf16.msra.mxu0 %v278
  %393 = vmatprep.subr.bf16.mxu0 0
  %394 = vmatpush1.bf16.msra.mxu0 %v279
  %395 = vmatprep.subr.bf16.mxu0 0
  %396 = vmatpush1.bf16.msra.mxu0 %v280
  %397 = vmatprep.subr.bf16.mxu0 0
  %398 = vmatpush1.bf16.msra.mxu0 %v281
  %399 = vmatprep.subr.bf16.mxu0 0
  %400 = vmatpush1.bf16.msra.mxu0 %v282
  %401 = vmatprep.subr.bf16.mxu0 0
  %402 = vmatpush1.bf16.msra.mxu0 %v283
  %403 = vmatprep.subr.bf16.mxu0 0
  %404 = vmatpush1.bf16.msra.mxu0 %v284
  %405 = vmatprep.subr.bf16.mxu0 0
  %406 = vmatpush1.bf16.msra.mxu0 %v285
  %407 = vmatprep.mubr.bf16.mxu0 %v30
  %408 = vmatmul.mubr.bf16.gmra.mrb[0].mxu0 %v29
  %v409 = vpop.f32.mrb[0].mxu0
  %v410 = vadd.f32 %v370, %v409
  %v411 = vpop.f32.mrb[0].mxu0
  %v412 = vpop.f32.mrb[0].mxu0
  %v413 = vpop.f32.mrb[0].mxu0
  %414 = vdwg.mxu0
  %415 = vmatprep.subr.bf16.mxu0 0
  %416 = vmatpush1.bf16.msra.mxu0 %v286
  %417 = vmatprep.subr.bf16.mxu0 0
  %418 = vmatpush1.bf16.msra.mxu0 %v287
  %419 = vmatprep.subr.bf16.mxu0 0
  %420 = vmatpush1.bf16.msra.mxu0 %v288
  %421 = vmatprep.subr.bf16.mxu0 0
  %422 = vmatpush1.bf16.msra.mxu0 %v289
  %423 = vmatprep.subr.bf16.mxu0 0
  %424 = vmatpush1.bf16.msra.mxu0 %v333
  %425 = vmatprep.subr.bf16.mxu0 0
  %426 = vmatpush1.bf16.msra.mxu0 0
  %427 = vmatprep.subr.bf16.mxu0 0
  %428 = vmatpush1.bf16.msra.mxu0 0
  %429 = vmatprep.subr.bf16.mxu0 0
  %430 = vmatpush1.bf16.msra.mxu0 0
  %431 = vmatprep.subr.bf16.mxu0 0
  %432 = vmatpush1.bf16.msra.mxu0 0
  %433 = vmatprep.subr.bf16.mxu0 0
  %434 = vmatpush1.bf16.msra.mxu0 0
  %435 = vmatprep.subr.bf16.mxu0 0
  %436 = vmatpush1.bf16.msra.mxu0 0
  %437 = vmatprep.subr.bf16.mxu0 0
  %438 = vmatpush1.bf16.msra.mxu0 0
  %439 = vmatprep.subr.bf16.mxu0 0
  %440 = vmatpush1.bf16.msra.mxu0 0
  %441 = vmatprep.subr.bf16.mxu0 0
  %442 = vmatpush1.bf16.msra.mxu0 0
  %443 = vmatprep.subr.bf16.mxu0 0
  %444 = vmatpush1.bf16.msra.mxu0 0
  %445 = vmatprep.subr.bf16.mxu0 0
  %446 = vmatpush1.bf16.msra.mxu0 0
  %447 = vmatprep.mubr.bf16.mxu0 0
  %448 = vmatmul.mubr.bf16.gmra.mrb[0].mxu0 %v329
  %v449 = vpop.f32.mrb[0].mxu0
  %v450 = vadd.f32 %v410, %v449
  %v451 = vpop.f32.mrb[0].mxu0
  %v452 = vpop.f32.mrb[0].mxu0
  %v453 = vpop.f32.mrb[0].mxu0
  %454 = vdwg.mxu0
  %v455 = vadd.f32 %v21, %v450
  %vm456 = vcmask 261120
  %457 = vst.msk [vmem:[#allocation2] sm:$0xff] %vm456, %v455
  // Predicated region
  $region18: #{dinov2_feature_extractor.12} parent=0 // pred_check
    %p458 = pneg %p15
  $region19: #{dinov2_feature_extractor.12} parent=0 // pred_check_branch
    %460 = sbr.rel (%p458) target = $region21
  $region20: #{dinov2_feature_extractor.12} parent=0 // pred_region
    %v461 = vld [vmem:[#allocation2] sm:$0xff]
    %v462 = vld [vmem:[%s2] sm:$0x1]
    %v464 = vlaneseq
    %v465 = vshrl.u32 %v464, 7
    %v466 = vsub.s32 0, %v465
    %v467 = vrot.slane %v462, %v466
    %v469 = vadd.f32 %v461, %v467
    %470 = vst.msk [vmem:[%s3] sm:$0xff] %vm456, %v469
  $region21: #{dinov2_feature_extractor.12} parent=0 // pred_fallthru
    _
  // Predicated region
  $region22: #{dinov2_feature_extractor.12} parent=0 // pred_check
    _
  $region23: #{dinov2_feature_extractor.12} parent=0 // pred_check_branch
    %472 = sbr.rel (0) target = $region25
  $region24: #{dinov2_feature_extractor.12} parent=0 // pred_region
    _
  $region25: #{dinov2_feature_extractor.12} parent=0 // pred_fallthru
    _
  // Predicated region
  $region26: #{dinov2_feature_extractor.12} parent=0 // pred_check
    _
  $region27: #{dinov2_feature_extractor.12} parent=0 // pred_check_branch
    %474 = sbr.rel (0) target = $region29
  $region28: #{dinov2_feature_extractor.12} parent=0 // pred_region
    _
  $region29: #{dinov2_feature_extractor.12} parent=0 // pred_fallthru
    _

// kernel: dinov2_feature_extractor.15
$region0: #{dinov2_feature_extractor.15}
  #allocation0 [shape = 'u32[]', space=smem, size = 0x4, offset = 0x4, fixed_abs, tag = 'smem constant byte address 0x4 - core index']
  #allocation1 [shape = 'u32[144,128]{1,0:T(1,128)}', space=vmem, size = 0x12000, scoped, tag = 'internal scratch']
  #allocation2 [shape = 'f32[16,32]{1,0:T(8,128)}', space=vmem, size = 0x2000, scoped, tag = 'scratch operand']
  %s0 = inlined_call_operand.vmem [shape: bf16[16,32], index: 0, kind: input, shape index: {}]
  %s1 = inlined_call_operand.vmem [shape: bf16[32,32], index: 1, kind: input, shape index: {}]
  %s2 = inlined_call_operand.vmem [shape: f32[1,32], index: 2, kind: input, shape index: {}]
  %s3 = inlined_call_operand.vmem [shape: f32[1,32], index: 3, kind: input, shape index: {}]
  %s4 = inlined_call_operand.vmem [shape: f32[16,32], index: 4, kind: input, shape index: {}, may-alias: {4,5}]
  %s5 = inlined_call_operand.vmem [shape: f32[16,32], index: 5, kind: output, shape index: {}, may-alias: {4,5}]
  %s6 = sld [smem:[#allocation0]]
  $region38: #{dinov2_feature_extractor.15} parent=0
    _
  %s8 = ssub.s32 1, %s6
  %s9 = scalar_select 0, %s8, %s6
  // Predicated region
  $region2: #{dinov2_feature_extractor.15} parent=0 // pred_check
    _
  $region3: #{dinov2_feature_extractor.15} parent=0 // pred_check_branch
    %11 = sbr.rel (0) target = $region5
  $region4: #{dinov2_feature_extractor.15} parent=0 // pred_region
    _
  $region5: #{dinov2_feature_extractor.15} parent=0 // pred_fallthru
    _
  // Predicated region
  $region6: #{dinov2_feature_extractor.15} parent=0 // pred_check
    _
  $region7: #{dinov2_feature_extractor.15} parent=0 // pred_check_branch
    %13 = sbr.rel (0) target = $region9
  $region8: #{dinov2_feature_extractor.15} parent=0 // pred_region
    _
  $region9: #{dinov2_feature_extractor.15} parent=0 // pred_fallthru
    _
  // Predicated region
  $region10: #{dinov2_feature_extractor.15} parent=0 // pred_check
    _
  $region11: #{dinov2_feature_extractor.15} parent=0 // pred_check_branch
    %15 = sbr.rel (0) target = $region13
  $region12: #{dinov2_feature_extractor.15} parent=0 // pred_region
    _
  $region13: #{dinov2_feature_extractor.15} parent=0 // pred_fallthru
    _
  // Predicated region
  $region14: #{dinov2_feature_extractor.15} parent=0 // pred_check
    _
  $region15: #{dinov2_feature_extractor.15} parent=0 // pred_check_branch
    %17 = sbr.rel (0) target = $region17
  $region16: #{dinov2_feature_extractor.15} parent=0 // pred_region
    _
  $region17: #{dinov2_feature_extractor.15} parent=0 // pred_fallthru
    _
  // Predicated region
  $region18: #{dinov2_feature_extractor.15} parent=0 // pred_check
    _
  $region19: #{dinov2_feature_extractor.15} parent=0 // pred_check_branch
    %19 = sbr.rel (0) target = $region21
  $region20: #{dinov2_feature_extractor.15} parent=0 // pred_region
    _
  $region21: #{dinov2_feature_extractor.15} parent=0 // pred_fallthru
    _
  %p21 = scmp.eq.s32.totalorder 0, 0
  // Predicated region
  $region22: #{dinov2_feature_extractor.15} parent=0 // pred_check
    %p22 = pneg %p21
  $region23: #{dinov2_feature_extractor.15} parent=0 // pred_check_branch
    %24 = sbr.rel (%p22) target = $region25
  $region24: #{dinov2_feature_extractor.15} parent=0 // pred_region
    %vm25 = vcmask 261120
    %26 = vst.msk [vmem:[#allocation2] sm:$0xff] %vm25, 0.0
    %27 = vst.msk [vmem:[#allocation2 + $0x8] sm:$0xff] %vm25, 0.0
  $region25: #{dinov2_feature_extractor.15} parent=0 // pred_fallthru
    _
  %v28 = vld [vmem:[#allocation2] sm:$0xff]
  %v29 = vld [vmem:[#allocation2 + $0x8] sm:$0xff]
  %v30 = vld [vmem:[%s0] sm:$0xf]
  %v31 = vld [vmem:[%s0 + $0x4] sm:$0xf]
  %v32 = vld [vmem:[%s1] sm:$0xf]
  %v33 = vld [vmem:[%s1 + $0x4] sm:$0xf]
  %v34 = vld [vmem:[%s1 + $0x8] sm:$0xf]
  %v35 = vld [vmem:[%s1 + $0xc] sm:$0xf]
  %v38 = vunpack.c.l.b16 %v30
  %v39 = vunpack.c.l.b16 %v31
  %v40 = vpack.c.b16 %v39, %v38
  %v45 = vunpack.c.l.b16 %v32
  %v46 = vunpack.c.l.b16 %v33
  %v47 = vunpack.c.l.b16 %v34
  %v48 = vunpack.c.l.b16 %v35
  %v49 = vpack.c.b16 %v46, %v45
  %v50 = vpack.c.b16 %v48, %v47
  %vm53 = vcmask 261120
  %v55 = vsel %vm53, %v40, 0
  %57 = vmatprep.subr.bf16.mxu0 0
  %58 = vmatpush1.bf16.msra.mxu0 %v49
  %59 = vmatprep.subr.bf16.mxu0 0
  %60 = vmatpush1.bf16.msra.mxu0 %v50
  %61 = vmatprep.subr.bf16.mxu0 0
  %62 = vmatpush1.bf16.msra.mxu0 0
  %63 = vmatprep.subr.bf16.mxu0 0
  %64 = vmatpush1.bf16.msra.mxu0 0
  %65 = vmatprep.subr.bf16.mxu0 0
  %66 = vmatpush1.bf16.msra.mxu0 0
  %67 = vmatprep.subr.bf16.mxu0 0
  %68 = vmatpush1.bf16.msra.mxu0 0
  %69 = vmatprep.subr.bf16.mxu0 0
  %70 = vmatpush1.bf16.msra.mxu0 0
  %71 = vmatprep.subr.bf16.mxu0 0
  %72 = vmatpush1.bf16.msra.mxu0 0
  %73 = vmatprep.subr.bf16.mxu0 0
  %74 = vmatpush1.bf16.msra.mxu0 0
  %75 = vmatprep.subr.bf16.mxu0 0
  %76 = vmatpush1.bf16.msra.mxu0 0
  %77 = vmatprep.subr.bf16.mxu0 0
  %78 = vmatpush1.bf16.msra.mxu0 0
  %79 = vmatprep.subr.bf16.mxu0 0
  %80 = vmatpush1.bf16.msra.mxu0 0
  %81 = vmatprep.subr.bf16.mxu0 0
  %82 = vmatpush1.bf16.msra.mxu0 0
  %83 = vmatprep.subr.bf16.mxu0 0
  %84 = vmatpush1.bf16.msra.mxu0 0
  %85 = vmatprep.subr.bf16.mxu0 0
  %86 = vmatpush1.bf16.msra.mxu0 0
  %87 = vmatprep.subr.bf16.mxu0 0
  %88 = vmatpush1.bf16.msra.mxu0 0
  %89 = vmatprep.mubr.bf16.mxu0 0
  %90 = vmatmul.mubr.bf16.gmra.mrb[0].mxu0 %v55
  %v91 = vpop.f32.mrb[0].mxu0
  %v92 = vadd.f32 0.0, %v91
  %v93 = vpop.f32.mrb[0].mxu0
  %v94 = vpop.f32.mrb[0].mxu0
  %v95 = vadd.f32 0.0, %v94
  %v96 = vpop.f32.mrb[0].mxu0
  %97 = vdwg.mxu0
  %v98 = vadd.f32 %v28, %v92
  %v99 = vadd.f32 %v29, %v95
  %100 = vst.msk [vmem:[#allocation2] sm:$0xff] %vm53, %v98
  %101 = vst.msk [vmem:[#allocation2 + $0x8] sm:$0xff] %vm53, %v99
  // Predicated region
  $region26: #{dinov2_feature_extractor.15} parent=0 // pred_check
    %p102 = pneg %p21
  $region27: #{dinov2_feature_extractor.15} parent=0 // pred_check_branch
    %104 = sbr.rel (%p102) target = $region29
  $region28: #{dinov2_feature_extractor.15} parent=0 // pred_region
    %v105 = vld [vmem:[%s4] sm:$0xff]
    %v106 = vld [vmem:[%s4 + $0x8] sm:$0xff]
    %v107 = vld [vmem:[%s3] sm:$0x1]
    %v108 = vld [vmem:[#allocation2] sm:$0xff]
    %v109 = vld [vmem:[#allocation2 + $0x8] sm:$0xff]
    %v110 = vld [vmem:[%s2] sm:$0x1]
    %v112 = vlaneseq
    %v113 = vshrl.u32 %v112, 7
    %v114 = vsub.s32 0, %v113
    %v115 = vrot.slane %v110, %v114
    %v117 = vadd.f32 %v108, %v115
    %v118 = vadd.f32 %v109, %v115
    %v120 = vlaneseq
    %v121 = vshrl.u32 %v120, 7
    %v122 = vsub.s32 0, %v121
    %v123 = vrot.slane %v107, %v122
    %v125 = vmul.f32 %v123, %v117
    %v126 = vmul.f32 %v123, %v118
    %v127 = vadd.f32 %v105, %v125
    %v128 = vadd.f32 %v106, %v126
    %129 = vst.msk [vmem:[%s5] sm:$0xff] %vm53, %v127
    %130 = vst.msk [vmem:[%s5 + $0x8] sm:$0xff] %vm53, %v128
  $region29: #{dinov2_feature_extractor.15} parent=0 // pred_fallthru
    _
  // Predicated region
  $region30: #{dinov2_feature_extractor.15} parent=0 // pred_check
    _
  $region31: #{dinov2_feature_extractor.15} parent=0 // pred_check_branch
    %132 = sbr.rel (0) target = $region33
  $region32: #{dinov2_feature_extractor.15} parent=0 // pred_region
    _
  $region33: #{dinov2_feature_extractor.15} parent=0 // pred_fallthru
    _
  // Predicated region
  $region34: #{dinov2_feature_extractor.15} parent=0 // pred_check
    _
  $region35: #{dinov2_feature_extractor.15} parent=0 // pred_check_branch
    %134 = sbr.rel (0) target = $region37
  $region36: #{dinov2_feature_extractor.15} parent=0 // pred_region
    _
  $region37: #{dinov2_feature_extractor.15} parent=0 // pred_fallthru
    _

// kernel: dinov2_feature_extractor.16
$region0: #{dinov2_feature_extractor.16}
  #allocation0 [shape = 'u32[]', space=smem, size = 0x4, offset = 0x4, fixed_abs, tag = 'smem constant byte address 0x4 - core index']
  #allocation1 [shape = 'u32[144,128]{1,0:T(1,128)}', space=vmem, size = 0x12000, scoped, tag = 'internal scratch']
  #allocation2 [shape = 'bf16[16,32]{1,0:T(16,128)(2,1)}', space=vmem, size = 0x1000, scoped, tag = 'scratch operand']
  %s0 = inlined_call_operand.vmem [shape: f32[16,32], index: 0, kind: input, shape index: {}]
  %s1 = inlined_call_operand.vmem [shape: f32[1,32], index: 1, kind: input, shape index: {}]
  %s2 = inlined_call_operand.vmem [shape: f32[1,32], index: 2, kind: input, shape index: {}]
  %s3 = inlined_call_operand.vmem [shape: bf16[32,128], index: 3, kind: input, shape index: {}]
  %s4 = inlined_call_operand.vmem [shape: f32[1,128], index: 4, kind: input, shape index: {}]
  %s5 = inlined_call_operand.vmem [shape: bf16[16,128], index: 5, kind: output, shape index: {}]
  %s6 = sld [smem:[#allocation0]]
  $region34: #{dinov2_feature_extractor.16} parent=0
    _
  %s8 = ssub.s32 1, %s6
  %s9 = scalar_select 0, %s8, %s6
  // Predicated region
  $region2: #{dinov2_feature_extractor.16} parent=0 // pred_check
    _
  $region3: #{dinov2_feature_extractor.16} parent=0 // pred_check_branch
    %11 = sbr.rel (0) target = $region5
  $region4: #{dinov2_feature_extractor.16} parent=0 // pred_region
    _
  $region5: #{dinov2_feature_extractor.16} parent=0 // pred_fallthru
    _
  // Predicated region
  $region6: #{dinov2_feature_extractor.16} parent=0 // pred_check
    _
  $region7: #{dinov2_feature_extractor.16} parent=0 // pred_check_branch
    %13 = sbr.rel (0) target = $region9
  $region8: #{dinov2_feature_extractor.16} parent=0 // pred_region
    _
  $region9: #{dinov2_feature_extractor.16} parent=0 // pred_fallthru
    _
  // Predicated region
  $region10: #{dinov2_feature_extractor.16} parent=0 // pred_check
    _
  $region11: #{dinov2_feature_extractor.16} parent=0 // pred_check_branch
    %15 = sbr.rel (0) target = $region13
  $region12: #{dinov2_feature_extractor.16} parent=0 // pred_region
    _
  $region13: #{dinov2_feature_extractor.16} parent=0 // pred_fallthru
    _
  // Predicated region
  $region14: #{dinov2_feature_extractor.16} parent=0 // pred_check
    _
  $region15: #{dinov2_feature_extractor.16} parent=0 // pred_check_branch
    %17 = sbr.rel (0) target = $region17
  $region16: #{dinov2_feature_extractor.16} parent=0 // pred_region
    _
  $region17: #{dinov2_feature_extractor.16} parent=0 // pred_fallthru
    _
  // Predicated region
  $region18: #{dinov2_feature_extractor.16} parent=0 // pred_check
    _
  $region19: #{dinov2_feature_extractor.16} parent=0 // pred_check_branch
    %19 = sbr.rel (0) target = $region21
  $region20: #{dinov2_feature_extractor.16} parent=0 // pred_region
    _
  $region21: #{dinov2_feature_extractor.16} parent=0 // pred_fallthru
    _
  %p21 = scmp.eq.s32.totalorder 0, 0
  // Predicated region
  $region22: #{dinov2_feature_extractor.16} parent=0 // pred_check
    %p22 = pneg %p21
  $region23: #{dinov2_feature_extractor.16} parent=0 // pred_check_branch
    %24 = sbr.rel (%p22) target = $region25
  $region24: #{dinov2_feature_extractor.16} parent=0 // pred_region
    %v25 = vld [vmem:[%s0] sm:$0xff]
    %v26 = vld [vmem:[%s0 + $0x8] sm:$0xff]
    %vm27 = vcmask 261120
    %v28 = vsel %vm27, %v25, 0.0
    %29 = vadd.xlane.f32.xlu0 %v28
    %v30 = vpop.xlane.xlu0 %29
    %v31 = vsel %vm27, %v26, 0.0
    %32 = vadd.xlane.f32.xlu0 %v31
    %v33 = vpop.xlane.xlu0 %32
    %v34 = vrcp.pop 32.0
    %v35 = vmul.f32 %v30, %v34
    %v36 = vmul.f32 %v33, %v34
    %v37 = vsub.f32 %v25, %v35
    %v38 = vsub.f32 %v26, %v36
    %v39 = vmul.f32 %v37, %v37
    %v40 = vmul.f32 %v38, %v38
    %v41 = vsel %vm27, %v39, 0.0
    %42 = vadd.xlane.f32.xlu0 %v41
    %v43 = vpop.xlane.xlu0 %42
    %v44 = vsel %vm27, %v40, 0.0
    %45 = vadd.xlane.f32.xlu0 %v44
    %v46 = vpop.xlane.xlu0 %45
    %v47 = vmul.f32 %v43, %v34
    %v48 = vmul.f32 %v46, %v34
    %v49 = vadd.f32 %v47, 1e-06
    %v50 = vadd.f32 %v48, 1e-06
    %v51 = vrsqrt.pop %v49
    %v52 = vrsqrt.pop %v50
    %v53 = vmul.f32 %v37, %v51
    %v54 = vmul.f32 %v38, %v52
    %v55 = vld [vmem:[%s1] sm:$0x1]
    %v57 = vlaneseq
    %v58 = vshrl.u32 %v57, 7
    %v59 = vsub.s32 0, %v58
    %v60 = vrot.slane %v55, %v59
    %v62 = vmul.f32 %v53, %v60
    %v63 = vmul.f32 %v54, %v60
    %v64 = vld [vmem:[%s2] sm:$0x1]
    %v66 = vlaneseq
    %v67 = vshrl.u32 %v66, 7
    %v68 = vsub.s32 0, %v67
    %v69 = vrot.slane %v64, %v68
    %v71 = vadd.f32 %v62, %v69
    %v72 = vadd.f32 %v63, %v69
    %v73 = vpack.c.bf16 %v72, %v71
    %74 = vst.msk [vmem:[#allocation2] sm:$0xff] %vm27, %v73
  $region25: #{dinov2_feature_extractor.16} parent=0 // pred_fallthru
    _
  %v75 = vld [vmem:[#allocation2] sm:$0xff]
  %v76 = vld [vmem:[%s3] sm:$0xf]
  %v77 = vld [vmem:[%s3 + $0x4] sm:$0xf]
  %v78 = vld [vmem:[%s3 + $0x8] sm:$0xf]
  %v79 = vld [vmem:[%s3 + $0xc] sm:$0xf]
  %v80 = vld [vmem:[%s4] sm:$0x1]
  %v82 = vlaneseq
  %v83 = vshrl.u32 %v82, 7
  %v84 = vsub.s32 0, %v83
  %v85 = vrot.slane %v80, %v84
  %v91 = vunpack.c.l.b16 %v76
  %v92 = vunpack.c.l.b16 %v77
  %v93 = vunpack.c.l.b16 %v78
  %v94 = vunpack.c.l.b16 %v79
  %v95 = vpack.c.b16 %v92, %v91
  %v96 = vpack.c.b16 %v94, %v93
  %vm99 = vcmask 261120
  %v101 = vsel %vm99, %v75, 0
  %103 = vmatprep.subr.bf16.mxu0 0
  %104 = vmatpush1.bf16.msra.mxu0 %v95
  %105 = vmatprep.subr.bf16.mxu0 0
  %106 = vmatpush1.bf16.msra.mxu0 %v96
  %107 = vmatprep.subr.bf16.mxu0 0
  %108 = vmatpush1.bf16.msra.mxu0 0
  %109 = vmatprep.subr.bf16.mxu0 0
  %110 = vmatpush1.bf16.msra.mxu0 0
  %111 = vmatprep.subr.bf16.mxu0 0
  %112 = vmatpush1.bf16.msra.mxu0 0
  %113 = vmatprep.subr.bf16.mxu0 0
  %114 = vmatpush1.bf16.msra.mxu0 0
  %115 = vmatprep.subr.bf16.mxu0 0
  %116 = vmatpush1.bf16.msra.mxu0 0
  %117 = vmatprep.subr.bf16.mxu0 0
  %118 = vmatpush1.bf16.msra.mxu0 0
  %119 = vmatprep.subr.bf16.mxu0 0
  %120 = vmatpush1.bf16.msra.mxu0 0
  %121 = vmatprep.subr.bf16.mxu0 0
  %122 = vmatpush1.bf16.msra.mxu0 0
  %123 = vmatprep.subr.bf16.mxu0 0
  %124 = vmatpush1.bf16.msra.mxu0 0
  %125 = vmatprep.subr.bf16.mxu0 0
  %126 = vmatpush1.bf16.msra.mxu0 0
  %127 = vmatprep.subr.bf16.mxu0 0
  %128 = vmatpush1.bf16.msra.mxu0 0
  %129 = vmatprep.subr.bf16.mxu0 0
  %130 = vmatpush1.bf16.msra.mxu0 0
  %131 = vmatprep.subr.bf16.mxu0 0
  %132 = vmatpush1.bf16.msra.mxu0 0
  %133 = vmatprep.subr.bf16.mxu0 0
  %134 = vmatpush1.bf16.msra.mxu0 0
  %135 = vmatprep.mubr.bf16.mxu0 0
  %136 = vmatmul.mubr.bf16.gmra.mrb[0].mxu0 %v101
  %v137 = vpop.f32.mrb[0].mxu0
  %v138 = vadd.f32 %v85, %v137
  %v139 = vpop.f32.mrb[0].mxu0
  %v140 = vpop.f32.mrb[0].mxu0
  %v141 = vadd.f32 %v85, %v140
  %v142 = vpop.f32.mrb[0].mxu0
  %143 = vdwg.mxu0
  %v144 = vmul.f32 %v138, 0.5
  %v145 = vmul.f32 %v141, 0.5
  %v146 = vmul.f32 %v138, 0.70710677
  %v147 = vmul.f32 %v141, 0.70710677
  %vm148 = vcmp.lt.f32.partialorder %v146, 0.0
  %vm149 = vcmp.lt.f32.partialorder %v147, 0.0
  %v150 = vsel %vm148, -1.0, 1.0
  %v151 = vsel %vm149, -1.0, 1.0
  %v152 = vand.u32 2147483647, %v146
  %v153 = vand.u32 2147483647, %v147
  %v154 = vmul.f32 %v152, 0.3275911
  %v155 = vmul.f32 %v153, 0.3275911
  %v156 = vadd.f32 %v154, 1.0
  %v157 = vadd.f32 %v155, 1.0
  %v158 = vrcp.pop %v156
  %v159 = vmul.f32 1.0, %v158
  %v160 = vrcp.pop %v157
  %v161 = vmul.f32 1.0, %v160
  %v162 = vmul.f32 %v159, 1.0614054
  %v163 = vmul.f32 %v161, 1.0614054
  %v164 = vadd.f32 %v162, -1.4531521
  %v165 = vadd.f32 %v163, -1.4531521
  %v166 = vmul.f32 %v164, %v159
  %v167 = vmul.f32 %v165, %v161
  %v168 = vadd.f32 %v166, 1.4214138
  %v169 = vadd.f32 %v167, 1.4214138
  %v170 = vmul.f32 %v168, %v159
  %v171 = vmul.f32 %v169, %v161
  %v172 = vadd.f32 %v170, -0.28449672
  %v173 = vadd.f32 %v171, -0.28449672
  %v174 = vmul.f32 %v172, %v159
  %v175 = vmul.f32 %v173, %v161
  %v176 = vadd.f32 %v174, 0.2548296
  %v177 = vadd.f32 %v175, 0.2548296
  %v178 = vmul.f32 %v176, %v159
  %v179 = vmul.f32 %v177, %v161
  %v180 = vsub.f32 0.0, %v152
  %v181 = vsub.f32 0.0, %v153
  %v182 = vmul.f32 %v180, %v152
  %v183 = vmul.f32 %v181, %v153
  %v184 = vmul.f32 %v182, 1.442695
  %v185 = vpow.pop %v184
  %v186 = vmul.f32 %v183, 1.442695
  %v187 = vpow.pop %v186
  %v188 = vmul.f32 %v178, %v185
  %v189 = vmul.f32 %v179, %v187
  %v190 = vsub.f32 1.0, %v188
  %v191 = vsub.f32 1.0, %v189
  %v192 = vmul.f32 %v150, %v190
  %v193 = vmul.f32 %v151, %v191
  %v194 = vadd.f32 %v192, 1.0
  %v195 = vadd.f32 %v193, 1.0
  %v196 = vmul.f32 %v144, %v194
  %v197 = vmul.f32 %v145, %v195
  %v198 = vpack.c.bf16 %v197, %v196
  %v200 = vunpack.c.l.b16 %v198
  %v201 = vunpack.c.h.b16 %v198
  %v202 = vpack.c.b16 %v200, %v200
  %v203 = vpack.c.b16 %v201, %v201
  %206 = vst [vmem:[%s5] sm:$0xf] %v202
  %207 = vst [vmem:[%s5 + $0x4] sm:$0xf] %v203
  // Predicated region
  $region26: #{dinov2_feature_extractor.16} parent=0 // pred_check
    _
  $region27: #{dinov2_feature_extractor.16} parent=0 // pred_check_branch
    %209 = sbr.rel (0) target = $region29
  $region28: #{dinov2_feature_extractor.16} parent=0 // pred_region
    _
  $region29: #{dinov2_feature_extractor.16} parent=0 // pred_fallthru
    _
  // Predicated region
  $region30: #{dinov2_feature_extractor.16} parent=0 // pred_check
    _
  $region31: #{dinov2_feature_extractor.16} parent=0 // pred_check_branch
    %211 = sbr.rel (0) target = $region33
  $region32: #{dinov2_feature_extractor.16} parent=0 // pred_region
    _
  $region33: #{dinov2_feature_extractor.16} parent=0 // pred_fallthru
    _

// kernel: dinov2_feature_extractor.17
$region0: #{dinov2_feature_extractor.17}
  #allocation0 [shape = 'u32[]', space=smem, size = 0x4, offset = 0x4, fixed_abs, tag = 'smem constant byte address 0x4 - core index']
  #allocation1 [shape = 'u32[144,128]{1,0:T(1,128)}', space=vmem, size = 0x12000, scoped, tag = 'internal scratch']
  #allocation2 [shape = 'f32[16,32]{1,0:T(8,128)}', space=vmem, size = 0x2000, scoped, tag = 'scratch operand']
  %s0 = inlined_call_operand.vmem [shape: bf16[16,128], index: 0, kind: input, shape index: {}]
  %s1 = inlined_call_operand.vmem [shape: bf16[128,32], index: 1, kind: input, shape index: {}]
  %s2 = inlined_call_operand.vmem [shape: f32[1,32], index: 2, kind: input, shape index: {}]
  %s3 = inlined_call_operand.vmem [shape: f32[1,32], index: 3, kind: input, shape index: {}]
  %s4 = inlined_call_operand.vmem [shape: f32[16,32], index: 4, kind: input, shape index: {}, may-alias: {4,5}]
  %s5 = inlined_call_operand.vmem [shape: f32[16,32], index: 5, kind: output, shape index: {}, may-alias: {4,5}]
  %s6 = sld [smem:[#allocation0]]
  $region38: #{dinov2_feature_extractor.17} parent=0
    _
  %s8 = ssub.s32 1, %s6
  %s9 = scalar_select 0, %s8, %s6
  // Predicated region
  $region2: #{dinov2_feature_extractor.17} parent=0 // pred_check
    _
  $region3: #{dinov2_feature_extractor.17} parent=0 // pred_check_branch
    %11 = sbr.rel (0) target = $region5
  $region4: #{dinov2_feature_extractor.17} parent=0 // pred_region
    _
  $region5: #{dinov2_feature_extractor.17} parent=0 // pred_fallthru
    _
  // Predicated region
  $region6: #{dinov2_feature_extractor.17} parent=0 // pred_check
    _
  $region7: #{dinov2_feature_extractor.17} parent=0 // pred_check_branch
    %13 = sbr.rel (0) target = $region9
  $region8: #{dinov2_feature_extractor.17} parent=0 // pred_region
    _
  $region9: #{dinov2_feature_extractor.17} parent=0 // pred_fallthru
    _
  // Predicated region
  $region10: #{dinov2_feature_extractor.17} parent=0 // pred_check
    _
  $region11: #{dinov2_feature_extractor.17} parent=0 // pred_check_branch
    %15 = sbr.rel (0) target = $region13
  $region12: #{dinov2_feature_extractor.17} parent=0 // pred_region
    _
  $region13: #{dinov2_feature_extractor.17} parent=0 // pred_fallthru
    _
  // Predicated region
  $region14: #{dinov2_feature_extractor.17} parent=0 // pred_check
    _
  $region15: #{dinov2_feature_extractor.17} parent=0 // pred_check_branch
    %17 = sbr.rel (0) target = $region17
  $region16: #{dinov2_feature_extractor.17} parent=0 // pred_region
    _
  $region17: #{dinov2_feature_extractor.17} parent=0 // pred_fallthru
    _
  // Predicated region
  $region18: #{dinov2_feature_extractor.17} parent=0 // pred_check
    _
  $region19: #{dinov2_feature_extractor.17} parent=0 // pred_check_branch
    %19 = sbr.rel (0) target = $region21
  $region20: #{dinov2_feature_extractor.17} parent=0 // pred_region
    _
  $region21: #{dinov2_feature_extractor.17} parent=0 // pred_fallthru
    _
  %p21 = scmp.eq.s32.totalorder 0, 0
  // Predicated region
  $region22: #{dinov2_feature_extractor.17} parent=0 // pred_check
    %p22 = pneg %p21
  $region23: #{dinov2_feature_extractor.17} parent=0 // pred_check_branch
    %24 = sbr.rel (%p22) target = $region25
  $region24: #{dinov2_feature_extractor.17} parent=0 // pred_region
    %vm25 = vcmask 261120
    %26 = vst.msk [vmem:[#allocation2] sm:$0xff] %vm25, 0.0
    %27 = vst.msk [vmem:[#allocation2 + $0x8] sm:$0xff] %vm25, 0.0
  $region25: #{dinov2_feature_extractor.17} parent=0 // pred_fallthru
    _
  %v28 = vld [vmem:[#allocation2] sm:$0xff]
  %v29 = vld [vmem:[#allocation2 + $0x8] sm:$0xff]
  %v30 = vld [vmem:[%s0] sm:$0xf]
  %v31 = vld [vmem:[%s0 + $0x4] sm:$0xf]
  %v32 = vld [vmem:[%s1] sm:$0xf]
  %v33 = vld [vmem:[%s1 + $0x4] sm:$0xf]
  %v34 = vld [vmem:[%s1 + $0x8] sm:$0xf]
  %v35 = vld [vmem:[%s1 + $0xc] sm:$0xf]
  %v36 = vld [vmem:[%s1 + $0x10] sm:$0xf]
  %v37 = vld [vmem:[%s1 + $0x14] sm:$0xf]
  %v38 = vld [vmem:[%s1 + $0x18] sm:$0xf]
  %v39 = vld [vmem:[%s1 + $0x1c] sm:$0xf]
  %v40 = vld [vmem:[%s1 + $0x20] sm:$0xf]
  %v41 = vld [vmem:[%s1 + $0x24] sm:$0xf]
  %v42 = vld [vmem:[%s1 + $0x28] sm:$0xf]
  %v43 = vld [vmem:[%s1 + $0x2c] sm:$0xf]
  %v44 = vld [vmem:[%s1 + $0x30] sm:$0xf]
  %v45 = vld [vmem:[%s1 + $0x34] sm:$0xf]
  %v46 = vld [vmem:[%s1 + $0x38] sm:$0xf]
  %v47 = vld [vmem:[%s1 + $0x3c] sm:$0xf]
  %v50 = vunpack.c.l.b16 %v30
  %v51 = vunpack.c.l.b16 %v31
  %v52 = vpack.c.b16 %v51, %v50
  %v70 = vunpack.c.l.b16 %v32
  %v71 = vunpack.c.l.b16 %v33
  %v72 = vunpack.c.l.b16 %v34
  %v73 = vunpack.c.l.b16 %v35
  %v74 = vunpack.c.l.b16 %v36
  %v75 = vunpack.c.l.b16 %v37
  %v76 = vunpack.c.l.b16 %v38
  %v77 = vunpack.c.l.b16 %v39
  %v78 = vunpack.c.l.b16 %v40
  %v79 = vunpack.c.l.b16 %v41
  %v80 = vunpack.c.l.b16 %v42
  %v81 = vunpack.c.l.b16 %v43
  %v82 = vunpack.c.l.b16 %v44
  %v83 = vunpack.c.l.b16 %v45
  %v84 = vunpack.c.l.b16 %v46
  %v85 = vunpack.c.l.b16 %v47
  %v86 = vpack.c.b16 %v71, %v70
  %v87 = vpack.c.b16 %v73, %v72
  %v88 = vpack.c.b16 %v75, %v74
  %v89 = vpack.c.b16 %v77, %v76
  %v90 = vpack.c.b16 %v79, %v78
  %v91 = vpack.c.b16 %v81, %v80
  %v92 = vpack.c.b16 %v83, %v82
  %v93 = vpack.c.b16 %v85, %v84
  %102 = vmatprep.subr.bf16.mxu0 0
  %103 = vmatpush1.bf16.msra.mxu0 %v86
  %104 = vmatprep.subr.bf16.mxu0 0
  %105 = vmatpush1.bf16.msra.mxu0 %v87
  %106 = vmatprep.subr.bf16.mxu0 0
  %107 = vmatpush1.bf16.msra.mxu0 %v88
  %108 = vmatprep.subr.bf16.mxu0 0
  %109 = vmatpush1.bf16.msra.mxu0 %v89
  %110 = vmatprep.subr.bf16.mxu0 0
  %111 = vmatpush1.bf16.msra.mxu0 %v90
  %112 = vmatprep.subr.bf16.mxu0 0
  %113 = vmatpush1.bf16.msra.mxu0 %v91
  %114 = vmatprep.subr.bf16.mxu0 0
  %115 = vmatpush1.bf16.msra.mxu0 %v92
  %116 = vmatprep.subr.bf16.mxu0 0
  %117 = vmatpush1.bf16.msra.mxu0 %v93
  %118 = vmatprep.subr.bf16.mxu0 0
  %119 = vmatpush1.bf16.msra.mxu0 0
  %120 = vmatprep.subr.bf16.mxu0 0
  %121 = vmatpush1.bf16.msra.mxu0 0
  %122 = vmatprep.subr.bf16.mxu0 0
  %123 = vmatpush1.bf16.msra.mxu0 0
  %124 = vmatprep.subr.bf16.mxu0 0
  %125 = vmatpush1.bf16.msra.mxu0 0
  %126 = vmatprep.subr.bf16.mxu0 0
  %127 = vmatpush1.bf16.msra.mxu0 0
  %128 = vmatprep.subr.bf16.mxu0 0
  %129 = vmatpush1.bf16.msra.mxu0 0
  %130 = vmatprep.subr.bf16.mxu0 0
  %131 = vmatpush1.bf16.msra.mxu0 0
  %132 = vmatprep.subr.bf16.mxu0 0
  %133 = vmatpush1.bf16.msra.mxu0 0
  %134 = vmatprep.mubr.bf16.mxu0 0
  %135 = vmatmul.mubr.bf16.gmra.mrb[0].mxu0 %v52
  %v136 = vpop.f32.mrb[0].mxu0
  %v137 = vadd.f32 0.0, %v136
  %v138 = vpop.f32.mrb[0].mxu0
  %v139 = vpop.f32.mrb[0].mxu0
  %v140 = vadd.f32 0.0, %v139
  %v141 = vpop.f32.mrb[0].mxu0
  %142 = vdwg.mxu0
  %v143 = vadd.f32 %v28, %v137
  %v144 = vadd.f32 %v29, %v140
  %vm145 = vcmask 261120
  %146 = vst.msk [vmem:[#allocation2] sm:$0xff] %vm145, %v143
  %147 = vst.msk [vmem:[#allocation2 + $0x8] sm:$0xff] %vm145, %v144
  // Predicated region
  $region26: #{dinov2_feature_extractor.17} parent=0 // pred_check
    %p148 = pneg %p21
  $region27: #{dinov2_feature_extractor.17} parent=0 // pred_check_branch
    %150 = sbr.rel (%p148) target = $region29
  $region28: #{dinov2_feature_extractor.17} parent=0 // pred_region
    %v151 = vld [vmem:[%s4] sm:$0xff]
    %v152 = vld [vmem:[%s4 + $0x8] sm:$0xff]
    %v153 = vld [vmem:[%s3] sm:$0x1]
    %v154 = vld [vmem:[#allocation2] sm:$0xff]
    %v155 = vld [vmem:[#allocation2 + $0x8] sm:$0xff]
    %v156 = vld [vmem:[%s2] sm:$0x1]
    %v158 = vlaneseq
    %v159 = vshrl.u32 %v158, 7
    %v160 = vsub.s32 0, %v159
    %v161 = vrot.slane %v156, %v160
    %v163 = vadd.f32 %v154, %v161
    %v164 = vadd.f32 %v155, %v161
    %v166 = vlaneseq
    %v167 = vshrl.u32 %v166, 7
    %v168 = vsub.s32 0, %v167
    %v169 = vrot.slane %v153, %v168
    %v171 = vmul.f32 %v169, %v163
    %v172 = vmul.f32 %v169, %v164
    %v173 = vadd.f32 %v151, %v171
    %v174 = vadd.f32 %v152, %v172
    %175 = vst.msk [vmem:[%s5] sm:$0xff] %vm145, %v173
    %176 = vst.msk [vmem:[%s5 + $0x8] sm:$0xff] %vm145, %v174
  $region29: #{dinov2_feature_extractor.17} parent=0 // pred_fallthru
    _
  // Predicated region
  $region30: #{dinov2_feature_extractor.17} parent=0 // pred_check
    _
  $region31: #{dinov2_feature_extractor.17} parent=0 // pred_check_branch
    %178 = sbr.rel (0) target = $region33
  $region32: #{dinov2_feature_extractor.17} parent=0 // pred_region
    _
  $region33: #{dinov2_feature_extractor.17} parent=0 // pred_fallthru
    _
  // Predicated region
  $region34: #{dinov2_feature_extractor.17} parent=0 // pred_check
    _
  $region35: #{dinov2_feature_extractor.17} parent=0 // pred_check_branch
    %180 = sbr.rel (0) target = $region37
  $region36: #{dinov2_feature_extractor.17} parent=0 // pred_region
    _
  $region37: #{dinov2_feature_extractor.17} parent=0 // pred_fallthru
    _

// kernel: dinov2_feature_extractor.23
$region0: #{dinov2_feature_extractor.23}
  #allocation0 [shape = 'u32[]', space=smem, size = 0x4, offset = 0x4, fixed_abs, tag = 'smem constant byte address 0x4 - core index']
  #allocation1 [shape = 'u32[144,128]{1,0:T(1,128)}', space=vmem, size = 0x12000, scoped, tag = 'internal scratch']
  %s0 = inlined_call_operand.vmem [shape: f32[16,32], index: 0, kind: input, shape index: {}]
  %s1 = inlined_call_operand.vmem [shape: f32[1,32], index: 1, kind: input, shape index: {}]
  %s2 = inlined_call_operand.vmem [shape: f32[1,32], index: 2, kind: input, shape index: {}]
  %s3 = inlined_call_operand.vmem [shape: f32[16,32], index: 3, kind: output, shape index: {}]
  %s4 = sld [smem:[#allocation0]]
  $region22: #{dinov2_feature_extractor.23} parent=0
    _
  %s6 = ssub.s32 1, %s4
  %s7 = scalar_select 0, %s6, %s4
  // Predicated region
  $region2: #{dinov2_feature_extractor.23} parent=0 // pred_check
    _
  $region3: #{dinov2_feature_extractor.23} parent=0 // pred_check_branch
    %9 = sbr.rel (0) target = $region5
  $region4: #{dinov2_feature_extractor.23} parent=0 // pred_region
    _
  $region5: #{dinov2_feature_extractor.23} parent=0 // pred_fallthru
    _
  // Predicated region
  $region6: #{dinov2_feature_extractor.23} parent=0 // pred_check
    _
  $region7: #{dinov2_feature_extractor.23} parent=0 // pred_check_branch
    %11 = sbr.rel (0) target = $region9
  $region8: #{dinov2_feature_extractor.23} parent=0 // pred_region
    _
  $region9: #{dinov2_feature_extractor.23} parent=0 // pred_fallthru
    _
  // Predicated region
  $region10: #{dinov2_feature_extractor.23} parent=0 // pred_check
    _
  $region11: #{dinov2_feature_extractor.23} parent=0 // pred_check_branch
    %13 = sbr.rel (0) target = $region13
  $region12: #{dinov2_feature_extractor.23} parent=0 // pred_region
    _
  $region13: #{dinov2_feature_extractor.23} parent=0 // pred_fallthru
    _
  %v14 = vld [vmem:[%s0] sm:$0xff]
  %v15 = vld [vmem:[%s0 + $0x8] sm:$0xff]
  %vm16 = vcmask 261120
  %v17 = vsel %vm16, %v14, 0.0
  %18 = vadd.xlane.f32.xlu0 %v17
  %v19 = vpop.xlane.xlu0 %18
  %v20 = vsel %vm16, %v15, 0.0
  %21 = vadd.xlane.f32.xlu0 %v20
  %v22 = vpop.xlane.xlu0 %21
  %v23 = vrcp.pop 32.0
  %v24 = vmul.f32 %v19, %v23
  %v25 = vmul.f32 %v22, %v23
  %v26 = vsub.f32 %v14, %v24
  %v27 = vsub.f32 %v15, %v25
  %v28 = vmul.f32 %v26, %v26
  %v29 = vmul.f32 %v27, %v27
  %v30 = vsel %vm16, %v28, 0.0
  %31 = vadd.xlane.f32.xlu0 %v30
  %v32 = vpop.xlane.xlu0 %31
  %v33 = vsel %vm16, %v29, 0.0
  %34 = vadd.xlane.f32.xlu0 %v33
  %v35 = vpop.xlane.xlu0 %34
  %v36 = vmul.f32 %v32, %v23
  %v37 = vmul.f32 %v35, %v23
  %v38 = vadd.f32 %v36, 1e-06
  %v39 = vadd.f32 %v37, 1e-06
  %v40 = vrsqrt.pop %v38
  %v41 = vrsqrt.pop %v39
  %v42 = vmul.f32 %v26, %v40
  %v43 = vmul.f32 %v27, %v41
  %v44 = vld [vmem:[%s1] sm:$0x1]
  %v46 = vlaneseq
  %v47 = vshrl.u32 %v46, 7
  %v48 = vsub.s32 0, %v47
  %v49 = vrot.slane %v44, %v48
  %v51 = vmul.f32 %v42, %v49
  %v52 = vmul.f32 %v43, %v49
  %v53 = vld [vmem:[%s2] sm:$0x1]
  %v55 = vlaneseq
  %v56 = vshrl.u32 %v55, 7
  %v57 = vsub.s32 0, %v56
  %v58 = vrot.slane %v53, %v57
  %v60 = vadd.f32 %v51, %v58
  %v61 = vadd.f32 %v52, %v58
  %62 = vst.msk [vmem:[%s3] sm:$0xff] %vm16, %v60
  %63 = vst.msk [vmem:[%s3 + $0x8] sm:$0xff] %vm16, %v61
  // Predicated region
  $region14: #{dinov2_feature_extractor.23} parent=0 // pred_check
    _
  $region15: #{dinov2_feature_extractor.23} parent=0 // pred_check_branch
    %65 = sbr.rel (0) target = $region17
  $region16: #{dinov2_feature_extractor.23} parent=0 // pred_region
    _
  $region17: #{dinov2_feature_extractor.23} parent=0 // pred_fallthru
    _
  // Predicated region
  $region18: #{dinov2_feature_extractor.23} parent=0 // pred_check
    _
  $region19: #{dinov2_feature_extractor.23} parent=0 // pred_check_branch
    %67 = sbr.rel (0) target = $region21
  $region20: #{dinov2_feature_extractor.23} parent=0 // pred_region
    _
  $region21: #{dinov2_feature_extractor.23} parent=0 // pred_fallthru
    _

</llo_original>
